<compile_context>
chip_gen: v6e
topology: v6e:2x2x1
jax: 0.10.0
libtpu: 0.0.40
codegen_flags: <defaults>
</compile_context>

<pallas_src>
import functools

import jax
import jax.numpy as jnp
from jax.experimental import pallas as pl
from jax.experimental.pallas import tpu as pltpu


VMEM_LIMIT = 48 * 1024 * 1024   # headroom under v7x's 64 MiB physical VMEM
MXU_DTYPE = jnp.bfloat16        # MXU operand dtype (accumulation stays f32)


def _tile(dim, pref, quantum):
    """Largest tile <= pref that divides dim and is a multiple of quantum,
    falling back to the full dim (always a legal block size)."""
    if dim <= pref:
        return dim
    t = (pref // quantum) * quantum
    while t >= quantum:
        if dim % t == 0:
            return t
        t -= quantum
    return dim


# ----------------------------- Pallas kernels -----------------------------

def _matmul_kernel(x_ref, w_ref, b_ref, o_ref, acc_ref, *, relu):
    """o = x @ w^T + b (opt. relu). w is torch-layout (N, K). 3-D grid (M,N,K)."""
    @pl.when(pl.program_id(2) == 0)
    def _():
        acc_ref[...] = jnp.zeros_like(acc_ref)

    acc_ref[...] += jax.lax.dot_general(
        x_ref[...].astype(MXU_DTYPE), w_ref[...].astype(MXU_DTYPE),
        dimension_numbers=(((1,), (1,)), ((), ())),   # contract K with K (no .T)
        preferred_element_type=jnp.float32)

    @pl.when(pl.program_id(2) == pl.num_programs(2) - 1)
    def _():
        y = acc_ref[...] + b_ref[...].astype(jnp.float32)
        if relu:
            y = jnp.maximum(y, 0.0)
        o_ref[...] = y.astype(o_ref.dtype)


def _matmul_ln_res_kernel(x_ref, w_ref, b_ref, res_ref, g_ref, be_ref,
                          o_ref, acc_ref, *, eps):
    """o = LayerNorm(x @ w^T + b + residual) * gamma + beta. 2-D grid (M, K);
    full output row (N == H) kept resident so LN sees the whole feature dim."""
    @pl.when(pl.program_id(1) == 0)
    def _():
        acc_ref[...] = jnp.zeros_like(acc_ref)

    acc_ref[...] += jax.lax.dot_general(
        x_ref[...].astype(MXU_DTYPE), w_ref[...].astype(MXU_DTYPE),
        dimension_numbers=(((1,), (1,)), ((), ())),
        preferred_element_type=jnp.float32)

    @pl.when(pl.program_id(1) == pl.num_programs(1) - 1)
    def _():
        y = acc_ref[...] + b_ref[...].astype(jnp.float32) \
            + res_ref[...].astype(jnp.float32)
        mu = jnp.mean(y, axis=-1, keepdims=True)
        var = jnp.mean(jnp.square(y - mu), axis=-1, keepdims=True)
        yn = (y - mu) * jax.lax.rsqrt(var + eps)
        o_ref[...] = (yn * g_ref[...] + be_ref[...]).astype(o_ref.dtype)


def _ln_res_kernel(x_ref, res_ref, g_ref, b_ref, o_ref, *, eps):
    """out = LayerNorm(x + residual) * gamma + beta (row-tiled)."""
    x = x_ref[...].astype(jnp.float32) + res_ref[...].astype(jnp.float32)
    mu = jnp.mean(x, axis=-1, keepdims=True)
    var = jnp.mean(jnp.square(x - mu), axis=-1, keepdims=True)
    y = (x - mu) * jax.lax.rsqrt(var + eps)
    o_ref[...] = (y * g_ref[...] + b_ref[...]).astype(o_ref.dtype)


def _attention_kernel(seq_ref, qkv_ref, o_ref, *, n_head, d_k, d_v, inv_temp):
    """One batch element, all heads.  qkv: (L, nH*(2*d_k+d_v)) fused slab.
    Causal + key-padding mask generated in-kernel from the item-id row."""
    L = qkv_ref.shape[0]
    sq = n_head * d_k
    qkv = qkv_ref[...].astype(jnp.float32)
    q, k, v = qkv[:, :sq], qkv[:, sq:2 * sq], qkv[:, 2 * sq:]

    key_ok = seq_ref[...] != 0                                    # (1, L)
    row = jax.lax.broadcasted_iota(jnp.int32, (L, L), 0)
    col = jax.lax.broadcasted_iota(jnp.int32, (L, L), 1)
    allowed = (row >= col) & key_ok                               # (L, L)

    outs = []
    for h in range(n_head):                                       # static unroll
        q_h = (q[:, h * d_k:(h + 1) * d_k] * inv_temp).astype(MXU_DTYPE)
        k_h = k[:, h * d_k:(h + 1) * d_k].astype(MXU_DTYPE)
        v_h = v[:, h * d_v:(h + 1) * d_v].astype(MXU_DTYPE)
        s = jax.lax.dot_general(
            q_h, k_h, dimension_numbers=(((1,), (1,)), ((), ())),
            preferred_element_type=jnp.float32)                   # (L, L)
        s = jnp.where(allowed, s, -1.0e9)                         # masked_fill
        s = s - jnp.max(s, axis=-1, keepdims=True)
        p = jnp.exp(s)
        p = p * pl.reciprocal(jnp.sum(p, axis=-1, keepdims=True), approx=False)
        outs.append(jnp.dot(p.astype(MXU_DTYPE), v_h,
                            preferred_element_type=jnp.float32))
    o_ref[...] = jnp.concatenate(outs, axis=-1).astype(o_ref.dtype)


# ----------------------------- Pallas wrappers -----------------------------

def pallas_linear(x, weight, bias=None, relu=False, tm=256, tn=512, tk=512):
    """x: (..., K); weight: (N, K) torch layout; bias: (N,) or None."""
    lead = x.shape[:-1]
    K = x.shape[-1]
    N = weight.shape[0]
    x2 = x.reshape(-1, K)
    M = x2.shape[0]
    tm = _tile(M, tm, 8)
    tn = _tile(N, tn, 128)
    tk = _tile(K, tk, 128)
    b = bias if bias is not None else jnp.zeros((N,), x.dtype)
    y = pl.pallas_call(
        functools.partial(_matmul_kernel, relu=relu),
        grid=(M // tm, N // tn, K // tk),
        in_specs=[
            pl.BlockSpec((tm, tk), lambda i, j, kk: (i, kk)),
            pl.BlockSpec((tn, tk), lambda i, j, kk: (j, kk)),
            pl.BlockSpec((1, tn), lambda i, j, kk: (0, j)),
        ],
        out_specs=pl.BlockSpec((tm, tn), lambda i, j, kk: (i, j)),
        out_shape=jax.ShapeDtypeStruct((M, N), x.dtype),
        scratch_shapes=[pltpu.VMEM((tm, tn), jnp.float32)],
        compiler_params=pltpu.CompilerParams(
            dimension_semantics=("parallel", "parallel", "arbitrary"),
            vmem_limit_bytes=VMEM_LIMIT),
    )(x2, weight, b.reshape(1, N))
    return y.reshape(*lead, N)


def pallas_linear_ln_residual(x, weight, bias, residual, gamma, beta,
                              eps=1e-6, tm=256, tk=512):
    """LayerNorm(x @ w^T + b + residual); weight: (H, K) torch layout."""
    B, L, K = x.shape
    N = weight.shape[0]
    x2 = x.reshape(-1, K)
    res2 = residual.reshape(-1, N)
    M = x2.shape[0]
    tm = _tile(M, tm, 8)
    tk = _tile(K, tk, 128)
    b = bias if bias is not None else jnp.zeros((N,), x.dtype)
    y = pl.pallas_call(
        functools.partial(_matmul_ln_res_kernel, eps=eps),
        grid=(M // tm, K // tk),
        in_specs=[
            pl.BlockSpec((tm, tk), lambda i, kk: (i, kk)),
            pl.BlockSpec((N, tk), lambda i, kk: (0, kk)),
            pl.BlockSpec((1, N), lambda i, kk: (0, 0)),
            pl.BlockSpec((tm, N), lambda i, kk: (i, 0)),
            pl.BlockSpec((1, N), lambda i, kk: (0, 0)),
            pl.BlockSpec((1, N), lambda i, kk: (0, 0)),
        ],
        out_specs=pl.BlockSpec((tm, N), lambda i, kk: (i, 0)),
        out_shape=jax.ShapeDtypeStruct((M, N), x.dtype),
        scratch_shapes=[pltpu.VMEM((tm, N), jnp.float32)],
        compiler_params=pltpu.CompilerParams(
            dimension_semantics=("parallel", "arbitrary"),
            vmem_limit_bytes=VMEM_LIMIT),
    )(x2, weight, b.reshape(1, N), res2, gamma.reshape(1, N), beta.reshape(1, N))
    return y.reshape(B, L, N)


def pallas_layernorm_residual(x, residual, gamma, beta, eps=1e-6, tm=512):
    """LayerNorm(x + residual) over last dim; x/residual: (B, L, H)."""
    B, L, H = x.shape
    M = B * L
    tm = _tile(M, tm, 8)
    y = pl.pallas_call(
        functools.partial(_ln_res_kernel, eps=eps),
        grid=(M // tm,),
        in_specs=[
            pl.BlockSpec((tm, H), lambda i: (i, 0)),
            pl.BlockSpec((tm, H), lambda i: (i, 0)),
            pl.BlockSpec((1, H), lambda i: (0, 0)),
            pl.BlockSpec((1, H), lambda i: (0, 0)),
        ],
        out_specs=pl.BlockSpec((tm, H), lambda i: (i, 0)),
        out_shape=jax.ShapeDtypeStruct((M, H), x.dtype),
        compiler_params=pltpu.CompilerParams(
            dimension_semantics=("parallel",),
            vmem_limit_bytes=VMEM_LIMIT),
    )(x.reshape(M, H), residual.reshape(M, H),
      gamma.reshape(1, H), beta.reshape(1, H))
    return y.reshape(B, L, H)


def pallas_attention(item_seq, qkv, n_head, d_k, d_v):
    """qkv: (B, L, nH*(2*d_k+d_v)) fused projection slab.
    Mask built in-kernel from item_seq (causal + key padding)."""
    B, L, D_total = qkv.shape
    seq3 = item_seq.reshape(B, 1, L).astype(jnp.int32)
    return pl.pallas_call(
        functools.partial(_attention_kernel, n_head=n_head, d_k=d_k, d_v=d_v,
                          inv_temp=1.0 / (d_k ** 0.5)),
        grid=(B,),
        in_specs=[
            pl.BlockSpec((None, 1, L), lambda b: (b, 0, 0)),
            pl.BlockSpec((None, L, D_total), lambda b: (b, 0, 0)),
        ],
        out_specs=pl.BlockSpec((None, L, n_head * d_v), lambda b: (b, 0, 0)),
        out_shape=jax.ShapeDtypeStruct((B, L, n_head * d_v), qkv.dtype),
        compiler_params=pltpu.CompilerParams(
            dimension_semantics=("parallel",),
            vmem_limit_bytes=VMEM_LIMIT),
    )(seq3, qkv)


# ----------------------------- parameter init -----------------------------

def xavier_uniform(key, shape, dtype=jnp.float32):
    fan_out, fan_in = shape  # torch: fan_in = size(1), fan_out = size(0)
    bound = (6.0 / (fan_in + fan_out)) ** 0.5
    return jax.random.uniform(key, shape, dtype, -bound, bound)


def init_ssp_params(key, *, n_layers, n_heads, n_items, hidden_size, d_inner,
                    d_k, d_v, max_seq_len):
    keys = jax.random.split(key, 2 + 6 * n_layers)
    it = iter(keys)
    params = {
        "item_emb": xavier_uniform(next(it), (n_items, hidden_size)),
        "pos_emb": xavier_uniform(next(it), (max_seq_len, hidden_size)),
        "ln_g": jnp.ones((hidden_size,), jnp.float32),
        "ln_b": jnp.zeros((hidden_size,), jnp.float32),
        "layers": [],
    }
    for _ in range(n_layers):
        w_q = xavier_uniform(next(it), (n_heads * d_k, hidden_size))
        w_k = xavier_uniform(next(it), (n_heads * d_k, hidden_size))
        w_v = xavier_uniform(next(it), (n_heads * d_v, hidden_size))
        lp = {
            # fused QKV projection weight, torch layout (out, in)
            "w_qkv": jnp.concatenate([w_q, w_k, w_v], axis=0),
            "fc":  xavier_uniform(next(it), (hidden_size, n_heads * d_v)),
            "attn_ln_g": jnp.ones((hidden_size,), jnp.float32),
            "attn_ln_b": jnp.zeros((hidden_size,), jnp.float32),
            "w1": xavier_uniform(next(it), (d_inner, hidden_size)),
            "b1": jnp.zeros((d_inner,), jnp.float32),
            "w2": xavier_uniform(next(it), (hidden_size, d_inner)),
            "b2": jnp.zeros((hidden_size,), jnp.float32),
            "ffn_ln_g": jnp.ones((hidden_size,), jnp.float32),
            "ffn_ln_b": jnp.zeros((hidden_size,), jnp.float32),
        }
        params["layers"].append(lp)
    return params


# ----------------------------- model forward -----------------------------

def decoder_layer(lp, x, item_seq, n_head, d_k, d_v):
    residual = x
    # fused QKV projection: one matmul, x read from HBM once
    qkv = pallas_linear(x, lp["w_qkv"])               # (B, L, nH*(2*d_k+d_v))
    # attention consumes the fused slab directly (no HBM slicing of q/k/v)
    o = pallas_attention(item_seq, qkv, n_head, d_k, d_v)      # (B, L, nH*d_v)
    # fc (no bias) + dropout(identity) + residual + LayerNorm, fused
    x = pallas_linear_ln_residual(o, lp["fc"], None, residual,
                                  lp["attn_ln_g"], lp["attn_ln_b"])
    residual = x
    h = pallas_linear(x, lp["w1"], lp["b1"], relu=True)
    # w2 + dropout(identity) + residual + LayerNorm, fused
    x = pallas_linear_ln_residual(h, lp["w2"], lp["b2"], residual,
                                  lp["ffn_ln_g"], lp["ffn_ln_b"])
    return x


def ssp_forward(params, item_seq, n_head, d_k, d_v, need_reshape=True):
    B, L = item_seq.shape
    # Embedding gathers stay in plain JAX (glue).
    item_emb = params["item_emb"][item_seq]                          # (B, L, H)
    pos_emb = jnp.broadcast_to(params["pos_emb"][:L][None], item_emb.shape)
    # TODO(synk): dropout layers are identity here (inference semantics).
    hidden = pallas_layernorm_residual(item_emb, pos_emb,
                                       params["ln_g"], params["ln_b"])
    for lp in params["layers"]:
        hidden = decoder_layer(lp, hidden, item_seq, n_head, d_k, d_v)
    # item_prj weight is tied to the item embedding (no bias); torch layout
    # (n_items, H) is consumed directly (no transpose/copy of the big weight).
    logits = pallas_linear(hidden, params["item_emb"])               # (B,L,n_items)
    if need_reshape:
        logits = logits.reshape(-1, logits.shape[-1])
    return logits


# --------------------------------- main -----------------------------------

if __name__ == "__main__":
    n_layers, n_heads = 2, 2
    n_items, hidden_size, d_inner = 64, 32, 64
    d_k = d_v = 16
    max_seq_len = 200
    B, L = 2, 8

    key = jax.random.PRNGKey(0)
    pkey, dkey = jax.random.split(key)
    params = init_ssp_params(pkey, n_layers=n_layers, n_heads=n_heads,
                             n_items=n_items, hidden_size=hidden_size,
                             d_inner=d_inner, d_k=d_k, d_v=d_v,
                             max_seq_len=max_seq_len)
    item_seq = jax.random.randint(dkey, (B, L), 0, n_items, dtype=jnp.int32)

    fwd = jax.jit(functools.partial(ssp_forward, n_head=n_heads, d_k=d_k, d_v=d_v))
    out = fwd(params, item_seq)
    jax.block_until_ready(out)
    assert out.shape == (B * L, n_items)
    assert jnp.all(jnp.isfinite(out))
    print("KERNEL_OK")
</pallas_src>

<mosaic_0001>
module attributes {stable_mosaic.version = 11 : i64} {
  func.func @_attention_kernel(%arg0: i32, %arg1: memref<1x1x8xi32, #tpu.memory_space<vmem>>, %arg2: memref<1x8x96xf32, #tpu.memory_space<vmem>>, %arg3: memref<1x8x32xf32, #tpu.memory_space<vmem>>) attributes {dimension_semantics = [#tpu.dimension_semantics<parallel>], iteration_bounds = array<i64: 2>, scalar_prefetch = 0 : i64, scratch_operands = 0 : i64, tpu.core_type = #tpu.core_type<tc>, window_params = [{transform_indices = @transform_0, window_bounds = array<i64: 1, 1, 8>}, {transform_indices = @transform_1, window_bounds = array<i64: 1, 8, 96>}, {transform_indices = @transform_2, window_bounds = array<i64: 1, 8, 32>}]} {
    %c0 = arith.constant 0 : index
    %c0_0 = arith.constant 0 : index
    %c0_1 = arith.constant 0 : index
    %0 = vector.load %arg2[%c0, %c0_0, %c0_1] : memref<1x8x96xf32, #tpu.memory_space<vmem>>, vector<1x8x96xf32>
    %1 = vector.shape_cast %0 : vector<1x8x96xf32> to vector<8x96xf32>
    %2 = vector.extract_strided_slice %1 {offsets = [0, 0], sizes = [8, 32], strides = [1, 1]} : vector<8x96xf32> to vector<8x32xf32>
    %3 = vector.extract_strided_slice %1 {offsets = [0, 32], sizes = [8, 32], strides = [1, 1]} : vector<8x96xf32> to vector<8x32xf32>
    %4 = vector.extract_strided_slice %1 {offsets = [0, 64], sizes = [8, 32], strides = [1, 1]} : vector<8x96xf32> to vector<8x32xf32>
    %c0_2 = arith.constant 0 : index
    %c0_3 = arith.constant 0 : index
    %c0_4 = arith.constant 0 : index
    %5 = vector.load %arg1[%c0_2, %c0_3, %c0_4] : memref<1x1x8xi32, #tpu.memory_space<vmem>>, vector<1x1x8xi32>
    %6 = vector.shape_cast %5 : vector<1x1x8xi32> to vector<1x8xi32>
    %c0_i32 = arith.constant 0 : i32
    %7 = vector.broadcast %c0_i32 : i32 to vector<1x8xi32>
    %8 = arith.cmpi ne, %6, %7 : vector<1x8xi32>
    %9 = tpu.iota {dimensions = array<i32: 0>} : vector<8x8xi32>
    %10 = tpu.iota {dimensions = array<i32: 1>} : vector<8x8xi32>
    %11 = arith.cmpi sge, %9, %10 : vector<8x8xi32>
    %12 = vector.broadcast %8 : vector<1x8xi1> to vector<8x8xi1>
    %13 = arith.andi %11, %12 : vector<8x8xi1>
    %14 = vector.extract_strided_slice %2 {offsets = [0, 0], sizes = [8, 16], strides = [1, 1]} : vector<8x32xf32> to vector<8x16xf32>
    %cst = arith.constant 2.500000e-01 : f32
    %15 = vector.broadcast %cst : f32 to vector<8x16xf32>
    %16 = arith.mulf %14, %15 : vector<8x16xf32>
    %17 = arith.truncf %16 : vector<8x16xf32> to vector<8x16xbf16>
    %18 = vector.extract_strided_slice %3 {offsets = [0, 0], sizes = [8, 16], strides = [1, 1]} : vector<8x32xf32> to vector<8x16xf32>
    %19 = arith.truncf %18 : vector<8x16xf32> to vector<8x16xbf16>
    %20 = vector.extract_strided_slice %4 {offsets = [0, 0], sizes = [8, 16], strides = [1, 1]} : vector<8x32xf32> to vector<8x16xf32>
    %21 = arith.truncf %20 : vector<8x16xf32> to vector<8x16xbf16>
    %cst_5 = arith.constant dense<0.000000e+00> : vector<8x8xf32>
    %22 = tpu.matmul %17, %19, %cst_5 {dimension_numbers = #tpu.dot_dimension_numbers<[1], [1], [0], [0], [0, 0, 1, 0], [], []>} : vector<8x16xbf16>, vector<8x16xbf16>, vector<8x8xf32> -> vector<8x8xf32>
    %cst_6 = arith.constant -1.000000e+09 : f32
    %23 = vector.broadcast %cst_6 : f32 to vector<8x8xf32>
    %24 = arith.select %13, %22, %23 : vector<8x8xi1>, vector<8x8xf32>
    %cst_7 = arith.constant dense<0xFF800000> : vector<8xf32>
    %25 = vector.multi_reduction <maximumf>, %24, %cst_7 [1] : vector<8x8xf32> to vector<8xf32>
    %26 = vector.shape_cast %25 : vector<8xf32> to vector<8x1xf32>
    %27 = vector.broadcast %26 : vector<8x1xf32> to vector<8x8xf32>
    %28 = arith.subf %24, %27 : vector<8x8xf32>
    %29 = math.exp %28 : vector<8x8xf32>
    %cst_8 = arith.constant dense<0.000000e+00> : vector<8xf32>
    %30 = vector.multi_reduction <add>, %29, %cst_8 [1] : vector<8x8xf32> to vector<8xf32>
    %31 = vector.shape_cast %30 : vector<8xf32> to vector<8x1xf32>
    %32 = tpu.reciprocal %31 : vector<8x1xf32> -> vector<8x1xf32>
    %33 = vector.broadcast %32 : vector<8x1xf32> to vector<8x8xf32>
    %34 = arith.mulf %29, %33 : vector<8x8xf32>
    %35 = arith.truncf %34 : vector<8x8xf32> to vector<8x8xbf16>
    %cst_9 = arith.constant dense<0.000000e+00> : vector<8x16xf32>
    %36 = tpu.matmul %35, %21, %cst_9 {dimension_numbers = #tpu.dot_dimension_numbers<[1], [0], [0], [1], [0, 0, 1, 1], [], []>} : vector<8x8xbf16>, vector<8x16xbf16>, vector<8x16xf32> -> vector<8x16xf32>
    %37 = vector.extract_strided_slice %2 {offsets = [0, 16], sizes = [8, 16], strides = [1, 1]} : vector<8x32xf32> to vector<8x16xf32>
    %cst_10 = arith.constant 2.500000e-01 : f32
    %38 = vector.broadcast %cst_10 : f32 to vector<8x16xf32>
    %39 = arith.mulf %37, %38 : vector<8x16xf32>
    %40 = arith.truncf %39 : vector<8x16xf32> to vector<8x16xbf16>
    %41 = vector.extract_strided_slice %3 {offsets = [0, 16], sizes = [8, 16], strides = [1, 1]} : vector<8x32xf32> to vector<8x16xf32>
    %42 = arith.truncf %41 : vector<8x16xf32> to vector<8x16xbf16>
    %43 = vector.extract_strided_slice %4 {offsets = [0, 16], sizes = [8, 16], strides = [1, 1]} : vector<8x32xf32> to vector<8x16xf32>
    %44 = arith.truncf %43 : vector<8x16xf32> to vector<8x16xbf16>
    %cst_11 = arith.constant dense<0.000000e+00> : vector<8x8xf32>
    %45 = tpu.matmul %40, %42, %cst_11 {dimension_numbers = #tpu.dot_dimension_numbers<[1], [1], [0], [0], [0, 0, 1, 0], [], []>} : vector<8x16xbf16>, vector<8x16xbf16>, vector<8x8xf32> -> vector<8x8xf32>
    %cst_12 = arith.constant -1.000000e+09 : f32
    %46 = vector.broadcast %cst_12 : f32 to vector<8x8xf32>
    %47 = arith.select %13, %45, %46 : vector<8x8xi1>, vector<8x8xf32>
    %cst_13 = arith.constant dense<0xFF800000> : vector<8xf32>
    %48 = vector.multi_reduction <maximumf>, %47, %cst_13 [1] : vector<8x8xf32> to vector<8xf32>
    %49 = vector.shape_cast %48 : vector<8xf32> to vector<8x1xf32>
    %50 = vector.broadcast %49 : vector<8x1xf32> to vector<8x8xf32>
    %51 = arith.subf %47, %50 : vector<8x8xf32>
    %52 = math.exp %51 : vector<8x8xf32>
    %cst_14 = arith.constant dense<0.000000e+00> : vector<8xf32>
    %53 = vector.multi_reduction <add>, %52, %cst_14 [1] : vector<8x8xf32> to vector<8xf32>
    %54 = vector.shape_cast %53 : vector<8xf32> to vector<8x1xf32>
    %55 = tpu.reciprocal %54 : vector<8x1xf32> -> vector<8x1xf32>
    %56 = vector.broadcast %55 : vector<8x1xf32> to vector<8x8xf32>
    %57 = arith.mulf %52, %56 : vector<8x8xf32>
    %58 = arith.truncf %57 : vector<8x8xf32> to vector<8x8xbf16>
    %cst_15 = arith.constant dense<0.000000e+00> : vector<8x16xf32>
    %59 = tpu.matmul %58, %44, %cst_15 {dimension_numbers = #tpu.dot_dimension_numbers<[1], [0], [0], [1], [0, 0, 1, 1], [], []>} : vector<8x8xbf16>, vector<8x16xbf16>, vector<8x16xf32> -> vector<8x16xf32>
    %60 = tpu.concatenate %36, %59 in 1 : vector<8x16xf32>, vector<8x16xf32> -> vector<8x32xf32>
    %c0_16 = arith.constant 0 : index
    %c0_17 = arith.constant 0 : index
    %c0_18 = arith.constant 0 : index
    %61 = vector.load %arg3[%c0_16, %c0_17, %c0_18] : memref<1x8x32xf32, #tpu.memory_space<vmem>>, vector<1x8x32xf32>
    %62 = vector.shape_cast %61 : vector<1x8x32xf32> to vector<8x32xf32>
    %63 = vector.shape_cast %60 : vector<8x32xf32> to vector<1x8x32xf32>
    tpu.vector_store %arg3[%c0_16, %c0_17, %c0_18], %63 {strides = array<i32>} : memref<1x8x32xf32, #tpu.memory_space<vmem>>, vector<1x8x32xf32>,
    return
  }
  func.func @transform_0(%arg0: i32) -> (i32, i32, i32) {
    %c0_i32 = arith.constant 0 : i32
    %c0_i32_0 = arith.constant 0 : i32
    %c0_i32_1 = arith.constant 0 : i32
    return %arg0, %c0_i32, %c0_i32_0 : i32, i32, i32
  }
  func.func @transform_1(%arg0: i32) -> (i32, i32, i32) {
    %c0_i32 = arith.constant 0 : i32
    %c0_i32_0 = arith.constant 0 : i32
    %c0_i32_1 = arith.constant 0 : i32
    return %arg0, %c0_i32, %c0_i32_0 : i32, i32, i32
  }
  func.func @transform_2(%arg0: i32) -> (i32, i32, i32) {
    %c0_i32 = arith.constant 0 : i32
    %c0_i32_0 = arith.constant 0 : i32
    %c0_i32_1 = arith.constant 0 : i32
    return %arg0, %c0_i32, %c0_i32_0 : i32, i32, i32
  }
}

module attributes {stable_mosaic.version = 11 : i64} {
  func.func @_matmul_ln_res_kernel(%arg0: i32, %arg1: i32, %arg2: memref<16x32xf32, #tpu.memory_space<vmem>>, %arg3: memref<32x32xf32, #tpu.memory_space<vmem>>, %arg4: memref<1x32xf32, #tpu.memory_space<vmem>>, %arg5: memref<16x32xf32, #tpu.memory_space<vmem>>, %arg6: memref<1x32xf32, #tpu.memory_space<vmem>>, %arg7: memref<1x32xf32, #tpu.memory_space<vmem>>, %arg8: memref<16x32xf32, #tpu.memory_space<vmem>>, %arg9: memref<16x32xf32, #tpu.memory_space<vmem>>) attributes {dimension_semantics = [#tpu.dimension_semantics<parallel>, #tpu.dimension_semantics<arbitrary>], iteration_bounds = array<i64: 1, 1>, scalar_prefetch = 0 : i64, scratch_operands = 1 : i64, tpu.core_type = #tpu.core_type<tc>, window_params = [{transform_indices = @transform_0, window_bounds = array<i64: 16, 32>}, {transform_indices = @transform_1, window_bounds = array<i64: 32, 32>}, {pipeline_mode = #tpu.pipeline_mode<synchronous>, transform_indices = @transform_2, window_bounds = array<i64: 1, 32>}, {transform_indices = @transform_3, window_bounds = array<i64: 16, 32>}, {pipeline_mode = #tpu.pipeline_mode<synchronous>, transform_indices = @transform_4, window_bounds = array<i64: 1, 32>}, {pipeline_mode = #tpu.pipeline_mode<synchronous>, transform_indices = @transform_5, window_bounds = array<i64: 1, 32>}, {transform_indices = @transform_6, window_bounds = array<i64: 16, 32>}]} {
    %c0_i32 = arith.constant 0 : i32
    %0 = arith.cmpi eq, %arg1, %c0_i32 : i32
    %1 = arith.extui %0 : i1 to i32
    %c0_i32_0 = arith.constant 0 : i32
    %2 = arith.cmpi ne, %1, %c0_i32_0 : i32
    scf.if %2 {
      %cst_10 = arith.constant 0.000000e+00 : f32
      %14 = vector.broadcast %cst_10 : f32 to vector<16x32xf32>
      %c0_11 = arith.constant 0 : index
      %c0_12 = arith.constant 0 : index
      %15 = vector.load %arg9[%c0_11, %c0_12] : memref<16x32xf32, #tpu.memory_space<vmem>>, vector<16x32xf32>
      tpu.vector_store %arg9[%c0_11, %c0_12], %14 {strides = array<i32>} : memref<16x32xf32, #tpu.memory_space<vmem>>, vector<16x32xf32>,
    } else {
    }
    %c0 = arith.constant 0 : index
    %c0_1 = arith.constant 0 : index
    %3 = vector.load %arg9[%c0, %c0_1] : memref<16x32xf32, #tpu.memory_space<vmem>>, vector<16x32xf32>
    %c0_2 = arith.constant 0 : index
    %c0_3 = arith.constant 0 : index
    %4 = vector.load %arg2[%c0_2, %c0_3] : memref<16x32xf32, #tpu.memory_space<vmem>>, vector<16x32xf32>
    %5 = arith.truncf %4 : vector<16x32xf32> to vector<16x32xbf16>
    %c0_4 = arith.constant 0 : index
    %c0_5 = arith.constant 0 : index
    %6 = vector.load %arg3[%c0_4, %c0_5] : memref<32x32xf32, #tpu.memory_space<vmem>>, vector<32x32xf32>
    %7 = arith.truncf %6 : vector<32x32xf32> to vector<32x32xbf16>
    %cst = arith.constant dense<0.000000e+00> : vector<16x32xf32>
    %8 = tpu.matmul %5, %7, %cst {dimension_numbers = #tpu.dot_dimension_numbers<[1], [1], [0], [0], [0, 0, 1, 0], [], []>} : vector<16x32xbf16>, vector<32x32xbf16>, vector<16x32xf32> -> vector<16x32xf32>
    %9 = arith.addf %3, %8 : vector<16x32xf32>
    %c0_6 = arith.constant 0 : index
    %c0_7 = arith.constant 0 : index
    %10 = vector.load %arg9[%c0_6, %c0_7] : memref<16x32xf32, #tpu.memory_space<vmem>>, vector<16x32xf32>
    tpu.vector_store %arg9[%c0_6, %c0_7], %9 {strides = array<i32>} : memref<16x32xf32, #tpu.memory_space<vmem>>, vector<16x32xf32>,
    %c0_i32_8 = arith.constant 0 : i32
    %11 = arith.cmpi eq, %arg1, %c0_i32_8 : i32
    %12 = arith.extui %11 : i1 to i32
    %c0_i32_9 = arith.constant 0 : i32
    %13 = arith.cmpi ne, %12, %c0_i32_9 : i32
    scf.if %13 {
      %c0_10 = arith.constant 0 : index
      %c0_11 = arith.constant 0 : index
      %14 = vector.load %arg9[%c0_10, %c0_11] : memref<16x32xf32, #tpu.memory_space<vmem>>, vector<16x32xf32>
      %c0_12 = arith.constant 0 : index
      %c0_13 = arith.constant 0 : index
      %15 = vector.load %arg4[%c0_12, %c0_13] : memref<1x32xf32, #tpu.memory_space<vmem>>, vector<1x32xf32>
      %16 = vector.broadcast %15 : vector<1x32xf32> to vector<16x32xf32>
      %17 = arith.addf %14, %16 : vector<16x32xf32>
      %c0_14 = arith.constant 0 : index
      %c0_15 = arith.constant 0 : index
      %18 = vector.load %arg5[%c0_14, %c0_15] : memref<16x32xf32, #tpu.memory_space<vmem>>, vector<16x32xf32>
      %19 = arith.addf %17, %18 : vector<16x32xf32>
      %cst_16 = arith.constant dense<0.000000e+00> : vector<16xf32>
      %20 = vector.multi_reduction <add>, %19, %cst_16 [1] : vector<16x32xf32> to vector<16xf32>
      %21 = vector.shape_cast %20 : vector<16xf32> to vector<16x1xf32>
      %cst_17 = arith.constant 3.200000e+01 : f32
      %22 = vector.broadcast %cst_17 : f32 to vector<16x1xf32>
      %23 = arith.divf %21, %22 : vector<16x1xf32>
      %24 = vector.broadcast %23 : vector<16x1xf32> to vector<16x32xf32>
      %25 = arith.subf %19, %24 : vector<16x32xf32>
      %26 = arith.mulf %25, %25 : vector<16x32xf32>
      %cst_18 = arith.constant dense<0.000000e+00> : vector<16xf32>
      %27 = vector.multi_reduction <add>, %26, %cst_18 [1] : vector<16x32xf32> to vector<16xf32>
      %28 = vector.shape_cast %27 : vector<16xf32> to vector<16x1xf32>
      %cst_19 = arith.constant 3.200000e+01 : f32
      %29 = vector.broadcast %cst_19 : f32 to vector<16x1xf32>
      %30 = arith.divf %28, %29 : vector<16x1xf32>
      %31 = vector.broadcast %23 : vector<16x1xf32> to vector<16x32xf32>
      %32 = arith.subf %19, %31 : vector<16x32xf32>
      %cst_20 = arith.constant 9.99999997E-7 : f32
      %33 = vector.broadcast %cst_20 : f32 to vector<16x1xf32>
      %34 = arith.addf %30, %33 : vector<16x1xf32>
      %35 = math.rsqrt %34 : vector<16x1xf32>
      %36 = vector.broadcast %35 : vector<16x1xf32> to vector<16x32xf32>
      %37 = arith.mulf %32, %36 : vector<16x32xf32>
      %c0_21 = arith.constant 0 : index
      %c0_22 = arith.constant 0 : index
      %38 = vector.load %arg6[%c0_21, %c0_22] : memref<1x32xf32, #tpu.memory_space<vmem>>, vector<1x32xf32>
      %39 = vector.broadcast %38 : vector<1x32xf32> to vector<16x32xf32>
      %40 = arith.mulf %37, %39 : vector<16x32xf32>
      %c0_23 = arith.constant 0 : index
      %c0_24 = arith.constant 0 : index
      %41 = vector.load %arg7[%c0_23, %c0_24] : memref<1x32xf32, #tpu.memory_space<vmem>>, vector<1x32xf32>
      %42 = vector.broadcast %41 : vector<1x32xf32> to vector<16x32xf32>
      %43 = arith.addf %40, %42 : vector<16x32xf32>
      %c0_25 = arith.constant 0 : index
      %c0_26 = arith.constant 0 : index
      %44 = vector.load %arg8[%c0_25, %c0_26] : memref<16x32xf32, #tpu.memory_space<vmem>>, vector<16x32xf32>
      tpu.vector_store %arg8[%c0_25, %c0_26], %43 {strides = array<i32>} : memref<16x32xf32, #tpu.memory_space<vmem>>, vector<16x32xf32>,
    } else {
    }
    return
  }
  func.func @transform_0(%arg0: i32, %arg1: i32) -> (i32, i32) {
    %c0_i32 = arith.constant 0 : i32
    return %arg0, %arg1 : i32, i32
  }
  func.func @transform_1(%arg0: i32, %arg1: i32) -> (i32, i32) {
    %c0_i32 = arith.constant 0 : i32
    %c0_i32_0 = arith.constant 0 : i32
    return %c0_i32, %arg1 : i32, i32
  }
  func.func @transform_2(%arg0: i32, %arg1: i32) -> (i32, i32) {
    %c0_i32 = arith.constant 0 : i32
    %c0_i32_0 = arith.constant 0 : i32
    %c0_i32_1 = arith.constant 0 : i32
    return %c0_i32, %c0_i32_0 : i32, i32
  }
  func.func @transform_3(%arg0: i32, %arg1: i32) -> (i32, i32) {
    %c0_i32 = arith.constant 0 : i32
    %c0_i32_0 = arith.constant 0 : i32
    return %arg0, %c0_i32 : i32, i32
  }
  func.func @transform_4(%arg0: i32, %arg1: i32) -> (i32, i32) {
    %c0_i32 = arith.constant 0 : i32
    %c0_i32_0 = arith.constant 0 : i32
    %c0_i32_1 = arith.constant 0 : i32
    return %c0_i32, %c0_i32_0 : i32, i32
  }
  func.func @transform_5(%arg0: i32, %arg1: i32) -> (i32, i32) {
    %c0_i32 = arith.constant 0 : i32
    %c0_i32_0 = arith.constant 0 : i32
    %c0_i32_1 = arith.constant 0 : i32
    return %c0_i32, %c0_i32_0 : i32, i32
  }
  func.func @transform_6(%arg0: i32, %arg1: i32) -> (i32, i32) {
    %c0_i32 = arith.constant 0 : i32
    %c0_i32_0 = arith.constant 0 : i32
    return %arg0, %c0_i32 : i32, i32
  }
}

module attributes {stable_mosaic.version = 11 : i64} {
  func.func @_matmul_kernel(%arg0: i32, %arg1: i32, %arg2: i32, %arg3: memref<16x32xf32, #tpu.memory_space<vmem>>, %arg4: memref<96x32xf32, #tpu.memory_space<vmem>>, %arg5: memref<1x96xf32, #tpu.memory_space<vmem>>, %arg6: memref<16x96xf32, #tpu.memory_space<vmem>>, %arg7: memref<16x96xf32, #tpu.memory_space<vmem>>) attributes {dimension_semantics = [#tpu.dimension_semantics<parallel>, #tpu.dimension_semantics<parallel>, #tpu.dimension_semantics<arbitrary>], iteration_bounds = array<i64: 1, 1, 1>, scalar_prefetch = 0 : i64, scratch_operands = 1 : i64, tpu.core_type = #tpu.core_type<tc>, window_params = [{transform_indices = @transform_0, window_bounds = array<i64: 16, 32>}, {transform_indices = @transform_1, window_bounds = array<i64: 96, 32>}, {transform_indices = @transform_2, window_bounds = array<i64: 1, 96>}, {transform_indices = @transform_3, window_bounds = array<i64: 16, 96>}]} {
    %c0_i32 = arith.constant 0 : i32
    %0 = arith.cmpi eq, %arg2, %c0_i32 : i32
    %1 = arith.extui %0 : i1 to i32
    %c0_i32_0 = arith.constant 0 : i32
    %2 = arith.cmpi ne, %1, %c0_i32_0 : i32
    scf.if %2 {
      %cst_10 = arith.constant 0.000000e+00 : f32
      %14 = vector.broadcast %cst_10 : f32 to vector<16x96xf32>
      %c0_11 = arith.constant 0 : index
      %c0_12 = arith.constant 0 : index
      %15 = vector.load %arg7[%c0_11, %c0_12] : memref<16x96xf32, #tpu.memory_space<vmem>>, vector<16x96xf32>
      tpu.vector_store %arg7[%c0_11, %c0_12], %14 {strides = array<i32>} : memref<16x96xf32, #tpu.memory_space<vmem>>, vector<16x96xf32>,
    } else {
    }
    %c0 = arith.constant 0 : index
    %c0_1 = arith.constant 0 : index
    %3 = vector.load %arg7[%c0, %c0_1] : memref<16x96xf32, #tpu.memory_space<vmem>>, vector<16x96xf32>
    %c0_2 = arith.constant 0 : index
    %c0_3 = arith.constant 0 : index
    %4 = vector.load %arg3[%c0_2, %c0_3] : memref<16x32xf32, #tpu.memory_space<vmem>>, vector<16x32xf32>
    %5 = arith.truncf %4 : vector<16x32xf32> to vector<16x32xbf16>
    %c0_4 = arith.constant 0 : index
    %c0_5 = arith.constant 0 : index
    %6 = vector.load %arg4[%c0_4, %c0_5] : memref<96x32xf32, #tpu.memory_space<vmem>>, vector<96x32xf32>
    %7 = arith.truncf %6 : vector<96x32xf32> to vector<96x32xbf16>
    %cst = arith.constant dense<0.000000e+00> : vector<16x96xf32>
    %8 = tpu.matmul %5, %7, %cst {dimension_numbers = #tpu.dot_dimension_numbers<[1], [1], [0], [0], [0, 0, 1, 0], [], []>} : vector<16x32xbf16>, vector<96x32xbf16>, vector<16x96xf32> -> vector<16x96xf32>
    %9 = arith.addf %3, %8 : vector<16x96xf32>
    %c0_6 = arith.constant 0 : index
    %c0_7 = arith.constant 0 : index
    %10 = vector.load %arg7[%c0_6, %c0_7] : memref<16x96xf32, #tpu.memory_space<vmem>>, vector<16x96xf32>
    tpu.vector_store %arg7[%c0_6, %c0_7], %9 {strides = array<i32>} : memref<16x96xf32, #tpu.memory_space<vmem>>, vector<16x96xf32>,
    %c0_i32_8 = arith.constant 0 : i32
    %11 = arith.cmpi eq, %arg2, %c0_i32_8 : i32
    %12 = arith.extui %11 : i1 to i32
    %c0_i32_9 = arith.constant 0 : i32
    %13 = arith.cmpi ne, %12, %c0_i32_9 : i32
    scf.if %13 {
      %c0_10 = arith.constant 0 : index
      %c0_11 = arith.constant 0 : index
      %14 = vector.load %arg7[%c0_10, %c0_11] : memref<16x96xf32, #tpu.memory_space<vmem>>, vector<16x96xf32>
      %c0_12 = arith.constant 0 : index
      %c0_13 = arith.constant 0 : index
      %15 = vector.load %arg5[%c0_12, %c0_13] : memref<1x96xf32, #tpu.memory_space<vmem>>, vector<1x96xf32>
      %16 = vector.broadcast %15 : vector<1x96xf32> to vector<16x96xf32>
      %17 = arith.addf %14, %16 : vector<16x96xf32>
      %c0_14 = arith.constant 0 : index
      %c0_15 = arith.constant 0 : index
      %18 = vector.load %arg6[%c0_14, %c0_15] : memref<16x96xf32, #tpu.memory_space<vmem>>, vector<16x96xf32>
      tpu.vector_store %arg6[%c0_14, %c0_15], %17 {strides = array<i32>} : memref<16x96xf32, #tpu.memory_space<vmem>>, vector<16x96xf32>,
    } else {
    }
    return
  }
  func.func @transform_0(%arg0: i32, %arg1: i32, %arg2: i32) -> (i32, i32) {
    %c0_i32 = arith.constant 0 : i32
    return %arg0, %arg2 : i32, i32
  }
  func.func @transform_1(%arg0: i32, %arg1: i32, %arg2: i32) -> (i32, i32) {
    %c0_i32 = arith.constant 0 : i32
    return %arg1, %arg2 : i32, i32
  }
  func.func @transform_2(%arg0: i32, %arg1: i32, %arg2: i32) -> (i32, i32) {
    %c0_i32 = arith.constant 0 : i32
    %c0_i32_0 = arith.constant 0 : i32
    return %c0_i32, %arg1 : i32, i32
  }
  func.func @transform_3(%arg0: i32, %arg1: i32, %arg2: i32) -> (i32, i32) {
    %c0_i32 = arith.constant 0 : i32
    return %arg0, %arg1 : i32, i32
  }
}

module attributes {stable_mosaic.version = 11 : i64} {
  func.func @_ln_res_kernel(%arg0: i32, %arg1: memref<16x32xf32, #tpu.memory_space<vmem>>, %arg2: memref<16x32xf32, #tpu.memory_space<vmem>>, %arg3: memref<1x32xf32, #tpu.memory_space<vmem>>, %arg4: memref<1x32xf32, #tpu.memory_space<vmem>>, %arg5: memref<16x32xf32, #tpu.memory_space<vmem>>) attributes {dimension_semantics = [#tpu.dimension_semantics<parallel>], iteration_bounds = array<i64: 1>, scalar_prefetch = 0 : i64, scratch_operands = 0 : i64, tpu.core_type = #tpu.core_type<tc>, window_params = [{transform_indices = @transform_0, window_bounds = array<i64: 16, 32>}, {transform_indices = @transform_1, window_bounds = array<i64: 16, 32>}, {pipeline_mode = #tpu.pipeline_mode<synchronous>, transform_indices = @transform_2, window_bounds = array<i64: 1, 32>}, {pipeline_mode = #tpu.pipeline_mode<synchronous>, transform_indices = @transform_3, window_bounds = array<i64: 1, 32>}, {transform_indices = @transform_4, window_bounds = array<i64: 16, 32>}]} {
    %c0 = arith.constant 0 : index
    %c0_0 = arith.constant 0 : index
    %0 = vector.load %arg1[%c0, %c0_0] : memref<16x32xf32, #tpu.memory_space<vmem>>, vector<16x32xf32>
    %c0_1 = arith.constant 0 : index
    %c0_2 = arith.constant 0 : index
    %1 = vector.load %arg2[%c0_1, %c0_2] : memref<16x32xf32, #tpu.memory_space<vmem>>, vector<16x32xf32>
    %2 = arith.addf %0, %1 : vector<16x32xf32>
    %cst = arith.constant dense<0.000000e+00> : vector<16xf32>
    %3 = vector.multi_reduction <add>, %2, %cst [1] : vector<16x32xf32> to vector<16xf32>
    %4 = vector.shape_cast %3 : vector<16xf32> to vector<16x1xf32>
    %cst_3 = arith.constant 3.200000e+01 : f32
    %5 = vector.broadcast %cst_3 : f32 to vector<16x1xf32>
    %6 = arith.divf %4, %5 : vector<16x1xf32>
    %7 = vector.broadcast %6 : vector<16x1xf32> to vector<16x32xf32>
    %8 = arith.subf %2, %7 : vector<16x32xf32>
    %9 = arith.mulf %8, %8 : vector<16x32xf32>
    %cst_4 = arith.constant dense<0.000000e+00> : vector<16xf32>
    %10 = vector.multi_reduction <add>, %9, %cst_4 [1] : vector<16x32xf32> to vector<16xf32>
    %11 = vector.shape_cast %10 : vector<16xf32> to vector<16x1xf32>
    %cst_5 = arith.constant 3.200000e+01 : f32
    %12 = vector.broadcast %cst_5 : f32 to vector<16x1xf32>
    %13 = arith.divf %11, %12 : vector<16x1xf32>
    %14 = vector.broadcast %6 : vector<16x1xf32> to vector<16x32xf32>
    %15 = arith.subf %2, %14 : vector<16x32xf32>
    %cst_6 = arith.constant 9.99999997E-7 : f32
    %16 = vector.broadcast %cst_6 : f32 to vector<16x1xf32>
    %17 = arith.addf %13, %16 : vector<16x1xf32>
    %18 = math.rsqrt %17 : vector<16x1xf32>
    %19 = vector.broadcast %18 : vector<16x1xf32> to vector<16x32xf32>
    %20 = arith.mulf %15, %19 : vector<16x32xf32>
    %c0_7 = arith.constant 0 : index
    %c0_8 = arith.constant 0 : index
    %21 = vector.load %arg3[%c0_7, %c0_8] : memref<1x32xf32, #tpu.memory_space<vmem>>, vector<1x32xf32>
    %22 = vector.broadcast %21 : vector<1x32xf32> to vector<16x32xf32>
    %23 = arith.mulf %20, %22 : vector<16x32xf32>
    %c0_9 = arith.constant 0 : index
    %c0_10 = arith.constant 0 : index
    %24 = vector.load %arg4[%c0_9, %c0_10] : memref<1x32xf32, #tpu.memory_space<vmem>>, vector<1x32xf32>
    %25 = vector.broadcast %24 : vector<1x32xf32> to vector<16x32xf32>
    %26 = arith.addf %23, %25 : vector<16x32xf32>
    %c0_11 = arith.constant 0 : index
    %c0_12 = arith.constant 0 : index
    %27 = vector.load %arg5[%c0_11, %c0_12] : memref<16x32xf32, #tpu.memory_space<vmem>>, vector<16x32xf32>
    tpu.vector_store %arg5[%c0_11, %c0_12], %26 {strides = array<i32>} : memref<16x32xf32, #tpu.memory_space<vmem>>, vector<16x32xf32>,
    return
  }
  func.func @transform_0(%arg0: i32) -> (i32, i32) {
    %c0_i32 = arith.constant 0 : i32
    %c0_i32_0 = arith.constant 0 : i32
    return %arg0, %c0_i32 : i32, i32
  }
  func.func @transform_1(%arg0: i32) -> (i32, i32) {
    %c0_i32 = arith.constant 0 : i32
    %c0_i32_0 = arith.constant 0 : i32
    return %arg0, %c0_i32 : i32, i32
  }
  func.func @transform_2(%arg0: i32) -> (i32, i32) {
    %c0_i32 = arith.constant 0 : i32
    %c0_i32_0 = arith.constant 0 : i32
    %c0_i32_1 = arith.constant 0 : i32
    return %c0_i32, %c0_i32_0 : i32, i32
  }
  func.func @transform_3(%arg0: i32) -> (i32, i32) {
    %c0_i32 = arith.constant 0 : i32
    %c0_i32_0 = arith.constant 0 : i32
    %c0_i32_1 = arith.constant 0 : i32
    return %c0_i32, %c0_i32_0 : i32, i32
  }
  func.func @transform_4(%arg0: i32) -> (i32, i32) {
    %c0_i32 = arith.constant 0 : i32
    %c0_i32_0 = arith.constant 0 : i32
    return %arg0, %c0_i32 : i32, i32
  }
}

module attributes {stable_mosaic.version = 11 : i64} {
  func.func @_matmul_kernel(%arg0: i32, %arg1: i32, %arg2: i32, %arg3: memref<16x32xf32, #tpu.memory_space<vmem>>, %arg4: memref<64x32xf32, #tpu.memory_space<vmem>>, %arg5: memref<1x64xf32, #tpu.memory_space<vmem>>, %arg6: memref<16x64xf32, #tpu.memory_space<vmem>>, %arg7: memref<16x64xf32, #tpu.memory_space<vmem>>) attributes {dimension_semantics = [#tpu.dimension_semantics<parallel>, #tpu.dimension_semantics<parallel>, #tpu.dimension_semantics<arbitrary>], iteration_bounds = array<i64: 1, 1, 1>, scalar_prefetch = 0 : i64, scratch_operands = 1 : i64, tpu.core_type = #tpu.core_type<tc>, window_params = [{transform_indices = @transform_0, window_bounds = array<i64: 16, 32>}, {transform_indices = @transform_1, window_bounds = array<i64: 64, 32>}, {transform_indices = @transform_2, window_bounds = array<i64: 1, 64>}, {transform_indices = @transform_3, window_bounds = array<i64: 16, 64>}]} {
    %c0_i32 = arith.constant 0 : i32
    %0 = arith.cmpi eq, %arg2, %c0_i32 : i32
    %1 = arith.extui %0 : i1 to i32
    %c0_i32_0 = arith.constant 0 : i32
    %2 = arith.cmpi ne, %1, %c0_i32_0 : i32
    scf.if %2 {
      %cst_10 = arith.constant 0.000000e+00 : f32
      %14 = vector.broadcast %cst_10 : f32 to vector<16x64xf32>
      %c0_11 = arith.constant 0 : index
      %c0_12 = arith.constant 0 : index
      %15 = vector.load %arg7[%c0_11, %c0_12] : memref<16x64xf32, #tpu.memory_space<vmem>>, vector<16x64xf32>
      tpu.vector_store %arg7[%c0_11, %c0_12], %14 {strides = array<i32>} : memref<16x64xf32, #tpu.memory_space<vmem>>, vector<16x64xf32>,
    } else {
    }
    %c0 = arith.constant 0 : index
    %c0_1 = arith.constant 0 : index
    %3 = vector.load %arg7[%c0, %c0_1] : memref<16x64xf32, #tpu.memory_space<vmem>>, vector<16x64xf32>
    %c0_2 = arith.constant 0 : index
    %c0_3 = arith.constant 0 : index
    %4 = vector.load %arg3[%c0_2, %c0_3] : memref<16x32xf32, #tpu.memory_space<vmem>>, vector<16x32xf32>
    %5 = arith.truncf %4 : vector<16x32xf32> to vector<16x32xbf16>
    %c0_4 = arith.constant 0 : index
    %c0_5 = arith.constant 0 : index
    %6 = vector.load %arg4[%c0_4, %c0_5] : memref<64x32xf32, #tpu.memory_space<vmem>>, vector<64x32xf32>
    %7 = arith.truncf %6 : vector<64x32xf32> to vector<64x32xbf16>
    %cst = arith.constant dense<0.000000e+00> : vector<16x64xf32>
    %8 = tpu.matmul %5, %7, %cst {dimension_numbers = #tpu.dot_dimension_numbers<[1], [1], [0], [0], [0, 0, 1, 0], [], []>} : vector<16x32xbf16>, vector<64x32xbf16>, vector<16x64xf32> -> vector<16x64xf32>
    %9 = arith.addf %3, %8 : vector<16x64xf32>
    %c0_6 = arith.constant 0 : index
    %c0_7 = arith.constant 0 : index
    %10 = vector.load %arg7[%c0_6, %c0_7] : memref<16x64xf32, #tpu.memory_space<vmem>>, vector<16x64xf32>
    tpu.vector_store %arg7[%c0_6, %c0_7], %9 {strides = array<i32>} : memref<16x64xf32, #tpu.memory_space<vmem>>, vector<16x64xf32>,
    %c0_i32_8 = arith.constant 0 : i32
    %11 = arith.cmpi eq, %arg2, %c0_i32_8 : i32
    %12 = arith.extui %11 : i1 to i32
    %c0_i32_9 = arith.constant 0 : i32
    %13 = arith.cmpi ne, %12, %c0_i32_9 : i32
    scf.if %13 {
      %c0_10 = arith.constant 0 : index
      %c0_11 = arith.constant 0 : index
      %14 = vector.load %arg7[%c0_10, %c0_11] : memref<16x64xf32, #tpu.memory_space<vmem>>, vector<16x64xf32>
      %c0_12 = arith.constant 0 : index
      %c0_13 = arith.constant 0 : index
      %15 = vector.load %arg5[%c0_12, %c0_13] : memref<1x64xf32, #tpu.memory_space<vmem>>, vector<1x64xf32>
      %16 = vector.broadcast %15 : vector<1x64xf32> to vector<16x64xf32>
      %17 = arith.addf %14, %16 : vector<16x64xf32>
      %cst_14 = arith.constant 0.000000e+00 : f32
      %18 = vector.broadcast %cst_14 : f32 to vector<16x64xf32>
      %19 = arith.maximumf %17, %18 : vector<16x64xf32>
      %c0_15 = arith.constant 0 : index
      %c0_16 = arith.constant 0 : index
      %20 = vector.load %arg6[%c0_15, %c0_16] : memref<16x64xf32, #tpu.memory_space<vmem>>, vector<16x64xf32>
      tpu.vector_store %arg6[%c0_15, %c0_16], %19 {strides = array<i32>} : memref<16x64xf32, #tpu.memory_space<vmem>>, vector<16x64xf32>,
    } else {
    }
    return
  }
  func.func @transform_0(%arg0: i32, %arg1: i32, %arg2: i32) -> (i32, i32) {
    %c0_i32 = arith.constant 0 : i32
    return %arg0, %arg2 : i32, i32
  }
  func.func @transform_1(%arg0: i32, %arg1: i32, %arg2: i32) -> (i32, i32) {
    %c0_i32 = arith.constant 0 : i32
    return %arg1, %arg2 : i32, i32
  }
  func.func @transform_2(%arg0: i32, %arg1: i32, %arg2: i32) -> (i32, i32) {
    %c0_i32 = arith.constant 0 : i32
    %c0_i32_0 = arith.constant 0 : i32
    return %c0_i32, %arg1 : i32, i32
  }
  func.func @transform_3(%arg0: i32, %arg1: i32, %arg2: i32) -> (i32, i32) {
    %c0_i32 = arith.constant 0 : i32
    return %arg0, %arg1 : i32, i32
  }
}

module attributes {stable_mosaic.version = 11 : i64} {
  func.func @_matmul_ln_res_kernel(%arg0: i32, %arg1: i32, %arg2: memref<16x64xf32, #tpu.memory_space<vmem>>, %arg3: memref<32x64xf32, #tpu.memory_space<vmem>>, %arg4: memref<1x32xf32, #tpu.memory_space<vmem>>, %arg5: memref<16x32xf32, #tpu.memory_space<vmem>>, %arg6: memref<1x32xf32, #tpu.memory_space<vmem>>, %arg7: memref<1x32xf32, #tpu.memory_space<vmem>>, %arg8: memref<16x32xf32, #tpu.memory_space<vmem>>, %arg9: memref<16x32xf32, #tpu.memory_space<vmem>>) attributes {dimension_semantics = [#tpu.dimension_semantics<parallel>, #tpu.dimension_semantics<arbitrary>], iteration_bounds = array<i64: 1, 1>, scalar_prefetch = 0 : i64, scratch_operands = 1 : i64, tpu.core_type = #tpu.core_type<tc>, window_params = [{transform_indices = @transform_0, window_bounds = array<i64: 16, 64>}, {transform_indices = @transform_1, window_bounds = array<i64: 32, 64>}, {pipeline_mode = #tpu.pipeline_mode<synchronous>, transform_indices = @transform_2, window_bounds = array<i64: 1, 32>}, {transform_indices = @transform_3, window_bounds = array<i64: 16, 32>}, {pipeline_mode = #tpu.pipeline_mode<synchronous>, transform_indices = @transform_4, window_bounds = array<i64: 1, 32>}, {pipeline_mode = #tpu.pipeline_mode<synchronous>, transform_indices = @transform_5, window_bounds = array<i64: 1, 32>}, {transform_indices = @transform_6, window_bounds = array<i64: 16, 32>}]} {
    %c0_i32 = arith.constant 0 : i32
    %0 = arith.cmpi eq, %arg1, %c0_i32 : i32
    %1 = arith.extui %0 : i1 to i32
    %c0_i32_0 = arith.constant 0 : i32
    %2 = arith.cmpi ne, %1, %c0_i32_0 : i32
    scf.if %2 {
      %cst_10 = arith.constant 0.000000e+00 : f32
      %14 = vector.broadcast %cst_10 : f32 to vector<16x32xf32>
      %c0_11 = arith.constant 0 : index
      %c0_12 = arith.constant 0 : index
      %15 = vector.load %arg9[%c0_11, %c0_12] : memref<16x32xf32, #tpu.memory_space<vmem>>, vector<16x32xf32>
      tpu.vector_store %arg9[%c0_11, %c0_12], %14 {strides = array<i32>} : memref<16x32xf32, #tpu.memory_space<vmem>>, vector<16x32xf32>,
    } else {
    }
    %c0 = arith.constant 0 : index
    %c0_1 = arith.constant 0 : index
    %3 = vector.load %arg9[%c0, %c0_1] : memref<16x32xf32, #tpu.memory_space<vmem>>, vector<16x32xf32>
    %c0_2 = arith.constant 0 : index
    %c0_3 = arith.constant 0 : index
    %4 = vector.load %arg2[%c0_2, %c0_3] : memref<16x64xf32, #tpu.memory_space<vmem>>, vector<16x64xf32>
    %5 = arith.truncf %4 : vector<16x64xf32> to vector<16x64xbf16>
    %c0_4 = arith.constant 0 : index
    %c0_5 = arith.constant 0 : index
    %6 = vector.load %arg3[%c0_4, %c0_5] : memref<32x64xf32, #tpu.memory_space<vmem>>, vector<32x64xf32>
    %7 = arith.truncf %6 : vector<32x64xf32> to vector<32x64xbf16>
    %cst = arith.constant dense<0.000000e+00> : vector<16x32xf32>
    %8 = tpu.matmul %5, %7, %cst {dimension_numbers = #tpu.dot_dimension_numbers<[1], [1], [0], [0], [0, 0, 1, 0], [], []>} : vector<16x64xbf16>, vector<32x64xbf16>, vector<16x32xf32> -> vector<16x32xf32>
    %9 = arith.addf %3, %8 : vector<16x32xf32>
    %c0_6 = arith.constant 0 : index
    %c0_7 = arith.constant 0 : index
    %10 = vector.load %arg9[%c0_6, %c0_7] : memref<16x32xf32, #tpu.memory_space<vmem>>, vector<16x32xf32>
    tpu.vector_store %arg9[%c0_6, %c0_7], %9 {strides = array<i32>} : memref<16x32xf32, #tpu.memory_space<vmem>>, vector<16x32xf32>,
    %c0_i32_8 = arith.constant 0 : i32
    %11 = arith.cmpi eq, %arg1, %c0_i32_8 : i32
    %12 = arith.extui %11 : i1 to i32
    %c0_i32_9 = arith.constant 0 : i32
    %13 = arith.cmpi ne, %12, %c0_i32_9 : i32
    scf.if %13 {
      %c0_10 = arith.constant 0 : index
      %c0_11 = arith.constant 0 : index
      %14 = vector.load %arg9[%c0_10, %c0_11] : memref<16x32xf32, #tpu.memory_space<vmem>>, vector<16x32xf32>
      %c0_12 = arith.constant 0 : index
      %c0_13 = arith.constant 0 : index
      %15 = vector.load %arg4[%c0_12, %c0_13] : memref<1x32xf32, #tpu.memory_space<vmem>>, vector<1x32xf32>
      %16 = vector.broadcast %15 : vector<1x32xf32> to vector<16x32xf32>
      %17 = arith.addf %14, %16 : vector<16x32xf32>
      %c0_14 = arith.constant 0 : index
      %c0_15 = arith.constant 0 : index
      %18 = vector.load %arg5[%c0_14, %c0_15] : memref<16x32xf32, #tpu.memory_space<vmem>>, vector<16x32xf32>
      %19 = arith.addf %17, %18 : vector<16x32xf32>
      %cst_16 = arith.constant dense<0.000000e+00> : vector<16xf32>
      %20 = vector.multi_reduction <add>, %19, %cst_16 [1] : vector<16x32xf32> to vector<16xf32>
      %21 = vector.shape_cast %20 : vector<16xf32> to vector<16x1xf32>
      %cst_17 = arith.constant 3.200000e+01 : f32
      %22 = vector.broadcast %cst_17 : f32 to vector<16x1xf32>
      %23 = arith.divf %21, %22 : vector<16x1xf32>
      %24 = vector.broadcast %23 : vector<16x1xf32> to vector<16x32xf32>
      %25 = arith.subf %19, %24 : vector<16x32xf32>
      %26 = arith.mulf %25, %25 : vector<16x32xf32>
      %cst_18 = arith.constant dense<0.000000e+00> : vector<16xf32>
      %27 = vector.multi_reduction <add>, %26, %cst_18 [1] : vector<16x32xf32> to vector<16xf32>
      %28 = vector.shape_cast %27 : vector<16xf32> to vector<16x1xf32>
      %cst_19 = arith.constant 3.200000e+01 : f32
      %29 = vector.broadcast %cst_19 : f32 to vector<16x1xf32>
      %30 = arith.divf %28, %29 : vector<16x1xf32>
      %31 = vector.broadcast %23 : vector<16x1xf32> to vector<16x32xf32>
      %32 = arith.subf %19, %31 : vector<16x32xf32>
      %cst_20 = arith.constant 9.99999997E-7 : f32
      %33 = vector.broadcast %cst_20 : f32 to vector<16x1xf32>
      %34 = arith.addf %30, %33 : vector<16x1xf32>
      %35 = math.rsqrt %34 : vector<16x1xf32>
      %36 = vector.broadcast %35 : vector<16x1xf32> to vector<16x32xf32>
      %37 = arith.mulf %32, %36 : vector<16x32xf32>
      %c0_21 = arith.constant 0 : index
      %c0_22 = arith.constant 0 : index
      %38 = vector.load %arg6[%c0_21, %c0_22] : memref<1x32xf32, #tpu.memory_space<vmem>>, vector<1x32xf32>
      %39 = vector.broadcast %38 : vector<1x32xf32> to vector<16x32xf32>
      %40 = arith.mulf %37, %39 : vector<16x32xf32>
      %c0_23 = arith.constant 0 : index
      %c0_24 = arith.constant 0 : index
      %41 = vector.load %arg7[%c0_23, %c0_24] : memref<1x32xf32, #tpu.memory_space<vmem>>, vector<1x32xf32>
      %42 = vector.broadcast %41 : vector<1x32xf32> to vector<16x32xf32>
      %43 = arith.addf %40, %42 : vector<16x32xf32>
      %c0_25 = arith.constant 0 : index
      %c0_26 = arith.constant 0 : index
      %44 = vector.load %arg8[%c0_25, %c0_26] : memref<16x32xf32, #tpu.memory_space<vmem>>, vector<16x32xf32>
      tpu.vector_store %arg8[%c0_25, %c0_26], %43 {strides = array<i32>} : memref<16x32xf32, #tpu.memory_space<vmem>>, vector<16x32xf32>,
    } else {
    }
    return
  }
  func.func @transform_0(%arg0: i32, %arg1: i32) -> (i32, i32) {
    %c0_i32 = arith.constant 0 : i32
    return %arg0, %arg1 : i32, i32
  }
  func.func @transform_1(%arg0: i32, %arg1: i32) -> (i32, i32) {
    %c0_i32 = arith.constant 0 : i32
    %c0_i32_0 = arith.constant 0 : i32
    return %c0_i32, %arg1 : i32, i32
  }
  func.func @transform_2(%arg0: i32, %arg1: i32) -> (i32, i32) {
    %c0_i32 = arith.constant 0 : i32
    %c0_i32_0 = arith.constant 0 : i32
    %c0_i32_1 = arith.constant 0 : i32
    return %c0_i32, %c0_i32_0 : i32, i32
  }
  func.func @transform_3(%arg0: i32, %arg1: i32) -> (i32, i32) {
    %c0_i32 = arith.constant 0 : i32
    %c0_i32_0 = arith.constant 0 : i32
    return %arg0, %c0_i32 : i32, i32
  }
  func.func @transform_4(%arg0: i32, %arg1: i32) -> (i32, i32) {
    %c0_i32 = arith.constant 0 : i32
    %c0_i32_0 = arith.constant 0 : i32
    %c0_i32_1 = arith.constant 0 : i32
    return %c0_i32, %c0_i32_0 : i32, i32
  }
  func.func @transform_5(%arg0: i32, %arg1: i32) -> (i32, i32) {
    %c0_i32 = arith.constant 0 : i32
    %c0_i32_0 = arith.constant 0 : i32
    %c0_i32_1 = arith.constant 0 : i32
    return %c0_i32, %c0_i32_0 : i32, i32
  }
  func.func @transform_6(%arg0: i32, %arg1: i32) -> (i32, i32) {
    %c0_i32 = arith.constant 0 : i32
    %c0_i32_0 = arith.constant 0 : i32
    return %arg0, %c0_i32 : i32, i32
  }
}

module attributes {stable_mosaic.version = 11 : i64} {
  func.func @_matmul_kernel(%arg0: i32, %arg1: i32, %arg2: i32, %arg3: memref<16x32xf32, #tpu.memory_space<vmem>>, %arg4: memref<64x32xf32, #tpu.memory_space<vmem>>, %arg5: memref<1x64xf32, #tpu.memory_space<vmem>>, %arg6: memref<16x64xf32, #tpu.memory_space<vmem>>, %arg7: memref<16x64xf32, #tpu.memory_space<vmem>>) attributes {dimension_semantics = [#tpu.dimension_semantics<parallel>, #tpu.dimension_semantics<parallel>, #tpu.dimension_semantics<arbitrary>], iteration_bounds = array<i64: 1, 1, 1>, scalar_prefetch = 0 : i64, scratch_operands = 1 : i64, tpu.core_type = #tpu.core_type<tc>, window_params = [{transform_indices = @transform_0, window_bounds = array<i64: 16, 32>}, {transform_indices = @transform_1, window_bounds = array<i64: 64, 32>}, {transform_indices = @transform_2, window_bounds = array<i64: 1, 64>}, {transform_indices = @transform_3, window_bounds = array<i64: 16, 64>}]} {
    %c0_i32 = arith.constant 0 : i32
    %0 = arith.cmpi eq, %arg2, %c0_i32 : i32
    %1 = arith.extui %0 : i1 to i32
    %c0_i32_0 = arith.constant 0 : i32
    %2 = arith.cmpi ne, %1, %c0_i32_0 : i32
    scf.if %2 {
      %cst_10 = arith.constant 0.000000e+00 : f32
      %14 = vector.broadcast %cst_10 : f32 to vector<16x64xf32>
      %c0_11 = arith.constant 0 : index
      %c0_12 = arith.constant 0 : index
      %15 = vector.load %arg7[%c0_11, %c0_12] : memref<16x64xf32, #tpu.memory_space<vmem>>, vector<16x64xf32>
      tpu.vector_store %arg7[%c0_11, %c0_12], %14 {strides = array<i32>} : memref<16x64xf32, #tpu.memory_space<vmem>>, vector<16x64xf32>,
    } else {
    }
    %c0 = arith.constant 0 : index
    %c0_1 = arith.constant 0 : index
    %3 = vector.load %arg7[%c0, %c0_1] : memref<16x64xf32, #tpu.memory_space<vmem>>, vector<16x64xf32>
    %c0_2 = arith.constant 0 : index
    %c0_3 = arith.constant 0 : index
    %4 = vector.load %arg3[%c0_2, %c0_3] : memref<16x32xf32, #tpu.memory_space<vmem>>, vector<16x32xf32>
    %5 = arith.truncf %4 : vector<16x32xf32> to vector<16x32xbf16>
    %c0_4 = arith.constant 0 : index
    %c0_5 = arith.constant 0 : index
    %6 = vector.load %arg4[%c0_4, %c0_5] : memref<64x32xf32, #tpu.memory_space<vmem>>, vector<64x32xf32>
    %7 = arith.truncf %6 : vector<64x32xf32> to vector<64x32xbf16>
    %cst = arith.constant dense<0.000000e+00> : vector<16x64xf32>
    %8 = tpu.matmul %5, %7, %cst {dimension_numbers = #tpu.dot_dimension_numbers<[1], [1], [0], [0], [0, 0, 1, 0], [], []>} : vector<16x32xbf16>, vector<64x32xbf16>, vector<16x64xf32> -> vector<16x64xf32>
    %9 = arith.addf %3, %8 : vector<16x64xf32>
    %c0_6 = arith.constant 0 : index
    %c0_7 = arith.constant 0 : index
    %10 = vector.load %arg7[%c0_6, %c0_7] : memref<16x64xf32, #tpu.memory_space<vmem>>, vector<16x64xf32>
    tpu.vector_store %arg7[%c0_6, %c0_7], %9 {strides = array<i32>} : memref<16x64xf32, #tpu.memory_space<vmem>>, vector<16x64xf32>,
    %c0_i32_8 = arith.constant 0 : i32
    %11 = arith.cmpi eq, %arg2, %c0_i32_8 : i32
    %12 = arith.extui %11 : i1 to i32
    %c0_i32_9 = arith.constant 0 : i32
    %13 = arith.cmpi ne, %12, %c0_i32_9 : i32
    scf.if %13 {
      %c0_10 = arith.constant 0 : index
      %c0_11 = arith.constant 0 : index
      %14 = vector.load %arg7[%c0_10, %c0_11] : memref<16x64xf32, #tpu.memory_space<vmem>>, vector<16x64xf32>
      %c0_12 = arith.constant 0 : index
      %c0_13 = arith.constant 0 : index
      %15 = vector.load %arg5[%c0_12, %c0_13] : memref<1x64xf32, #tpu.memory_space<vmem>>, vector<1x64xf32>
      %16 = vector.broadcast %15 : vector<1x64xf32> to vector<16x64xf32>
      %17 = arith.addf %14, %16 : vector<16x64xf32>
      %c0_14 = arith.constant 0 : index
      %c0_15 = arith.constant 0 : index
      %18 = vector.load %arg6[%c0_14, %c0_15] : memref<16x64xf32, #tpu.memory_space<vmem>>, vector<16x64xf32>
      tpu.vector_store %arg6[%c0_14, %c0_15], %17 {strides = array<i32>} : memref<16x64xf32, #tpu.memory_space<vmem>>, vector<16x64xf32>,
    } else {
    }
    return
  }
  func.func @transform_0(%arg0: i32, %arg1: i32, %arg2: i32) -> (i32, i32) {
    %c0_i32 = arith.constant 0 : i32
    return %arg0, %arg2 : i32, i32
  }
  func.func @transform_1(%arg0: i32, %arg1: i32, %arg2: i32) -> (i32, i32) {
    %c0_i32 = arith.constant 0 : i32
    return %arg1, %arg2 : i32, i32
  }
  func.func @transform_2(%arg0: i32, %arg1: i32, %arg2: i32) -> (i32, i32) {
    %c0_i32 = arith.constant 0 : i32
    %c0_i32_0 = arith.constant 0 : i32
    return %c0_i32, %arg1 : i32, i32
  }
  func.func @transform_3(%arg0: i32, %arg1: i32, %arg2: i32) -> (i32, i32) {
    %c0_i32 = arith.constant 0 : i32
    return %arg0, %arg1 : i32, i32
  }
}

</mosaic_0001>

<llo_original>
// kernel: ssp_forward.12
$region0: #{ssp_forward.12}
  #allocation0 [shape = 'u32[]', space=smem, size = 0x4, offset = 0x4, fixed_abs, tag = 'smem constant byte address 0x4 - core index']
  #allocation1 [shape = 'u32[144,128]{1,0:T(1,128)}', space=vmem, size = 0x12000, scoped, tag = 'internal scratch']
  %s0 = inlined_call_operand.vmem [shape: f32[16,32], index: 0, kind: input, shape index: {}]
  %s1 = inlined_call_operand.vmem [shape: f32[16,32], index: 1, kind: input, shape index: {}]
  %s2 = inlined_call_operand.vmem [shape: f32[1,32], index: 2, kind: input, shape index: {}]
  %s3 = inlined_call_operand.vmem [shape: f32[1,32], index: 3, kind: input, shape index: {}]
  %s4 = inlined_call_operand.vmem [shape: f32[16,32], index: 4, kind: output, shape index: {}]
  %s5 = sld [smem:[#allocation0]]
  $region26: #{ssp_forward.12} parent=0
    _
  %s7 = ssub.s32 1, %s5
  %s8 = scalar_select 0, %s7, %s5
  // Predicated region
  $region2: #{ssp_forward.12} parent=0 // pred_check
    _
  $region3: #{ssp_forward.12} parent=0 // pred_check_branch
    %10 = sbr.rel (0) target = $region5
  $region4: #{ssp_forward.12} parent=0 // pred_region
    _
  $region5: #{ssp_forward.12} parent=0 // pred_fallthru
    _
  // Predicated region
  $region6: #{ssp_forward.12} parent=0 // pred_check
    _
  $region7: #{ssp_forward.12} parent=0 // pred_check_branch
    %12 = sbr.rel (0) target = $region9
  $region8: #{ssp_forward.12} parent=0 // pred_region
    _
  $region9: #{ssp_forward.12} parent=0 // pred_fallthru
    _
  // Predicated region
  $region10: #{ssp_forward.12} parent=0 // pred_check
    _
  $region11: #{ssp_forward.12} parent=0 // pred_check_branch
    %14 = sbr.rel (0) target = $region13
  $region12: #{ssp_forward.12} parent=0 // pred_region
    _
  $region13: #{ssp_forward.12} parent=0 // pred_fallthru
    _
  // Predicated region
  $region14: #{ssp_forward.12} parent=0 // pred_check
    _
  $region15: #{ssp_forward.12} parent=0 // pred_check_branch
    %16 = sbr.rel (0) target = $region17
  $region16: #{ssp_forward.12} parent=0 // pred_region
    _
  $region17: #{ssp_forward.12} parent=0 // pred_fallthru
    _
  %v17 = vld [vmem:[%s0] sm:$0xff]
  %v18 = vld [vmem:[%s0 + $0x8] sm:$0xff]
  %v19 = vld [vmem:[%s1] sm:$0xff]
  %v20 = vld [vmem:[%s1 + $0x8] sm:$0xff]
  %v21 = vadd.f32 %v17, %v19
  %v22 = vadd.f32 %v18, %v20
  %vm23 = vcmask 261120
  %v24 = vsel %vm23, %v21, 0.0
  %25 = vadd.xlane.f32.xlu0 %v24
  %v26 = vpop.xlane.xlu0 %25
  %v27 = vsel %vm23, %v22, 0.0
  %28 = vadd.xlane.f32.xlu0 %v27
  %v29 = vpop.xlane.xlu0 %28
  %v30 = vrcp.pop 32.0
  %v31 = vmul.f32 %v26, %v30
  %v32 = vmul.f32 %v29, %v30
  %v33 = vsub.f32 %v21, %v31
  %v34 = vsub.f32 %v22, %v32
  %v35 = vmul.f32 %v33, %v33
  %v36 = vmul.f32 %v34, %v34
  %v37 = vsel %vm23, %v35, 0.0
  %38 = vadd.xlane.f32.xlu0 %v37
  %v39 = vpop.xlane.xlu0 %38
  %v40 = vsel %vm23, %v36, 0.0
  %41 = vadd.xlane.f32.xlu0 %v40
  %v42 = vpop.xlane.xlu0 %41
  %v43 = vmul.f32 %v39, %v30
  %v44 = vmul.f32 %v42, %v30
  %v45 = vadd.f32 %v43, 1e-06
  %v46 = vadd.f32 %v44, 1e-06
  %v47 = vrsqrt.pop %v45
  %v48 = vrsqrt.pop %v46
  %v49 = vmul.f32 %v33, %v47
  %v50 = vmul.f32 %v34, %v48
  %v51 = vld [vmem:[%s2] sm:$0x1]
  %v53 = vlaneseq
  %v54 = vshrl.u32 %v53, 7
  %v55 = vsub.s32 0, %v54
  %v56 = vrot.slane %v51, %v55
  %v58 = vmul.f32 %v49, %v56
  %v59 = vmul.f32 %v50, %v56
  %v60 = vld [vmem:[%s3] sm:$0x1]
  %v62 = vlaneseq
  %v63 = vshrl.u32 %v62, 7
  %v64 = vsub.s32 0, %v63
  %v65 = vrot.slane %v60, %v64
  %v67 = vadd.f32 %v58, %v65
  %v68 = vadd.f32 %v59, %v65
  %69 = vst.msk [vmem:[%s4] sm:$0xff] %vm23, %v67
  %70 = vst.msk [vmem:[%s4 + $0x8] sm:$0xff] %vm23, %v68
  // Predicated region
  $region18: #{ssp_forward.12} parent=0 // pred_check
    _
  $region19: #{ssp_forward.12} parent=0 // pred_check_branch
    %72 = sbr.rel (0) target = $region21
  $region20: #{ssp_forward.12} parent=0 // pred_region
    _
  $region21: #{ssp_forward.12} parent=0 // pred_fallthru
    _
  // Predicated region
  $region22: #{ssp_forward.12} parent=0 // pred_check
    _
  $region23: #{ssp_forward.12} parent=0 // pred_check_branch
    %74 = sbr.rel (0) target = $region25
  $region24: #{ssp_forward.12} parent=0 // pred_region
    _
  $region25: #{ssp_forward.12} parent=0 // pred_fallthru
    _

// kernel: ssp_forward.13
$region0: #{ssp_forward.13}
  #allocation0 [shape = 'u32[]', space=smem, size = 0x4, offset = 0x4, fixed_abs, tag = 'smem constant byte address 0x4 - core index']
  #allocation1 [shape = 'u32[144,128]{1,0:T(1,128)}', space=vmem, size = 0x12000, scoped, tag = 'internal scratch']
  #allocation2 [shape = 'f32[16,96]{1,0:T(8,128)}', space=vmem, size = 0x2000, scoped, tag = 'scratch operand']
  %s0 = inlined_call_operand.vmem [shape: f32[16,32], index: 0, kind: input, shape index: {}]
  %s1 = inlined_call_operand.vmem [shape: f32[96,32], index: 1, kind: input, shape index: {}]
  %s2 = inlined_call_operand.vmem [shape: f32[1,96], index: 2, kind: input, shape index: {}]
  %s3 = inlined_call_operand.vmem [shape: f32[16,96], index: 3, kind: output, shape index: {}]
  %s4 = sld [smem:[#allocation0]]
  $region30: #{ssp_forward.13} parent=0
    _
  %s6 = ssub.s32 1, %s4
  %s7 = scalar_select 0, %s6, %s4
  // Predicated region
  $region2: #{ssp_forward.13} parent=0 // pred_check
    _
  $region3: #{ssp_forward.13} parent=0 // pred_check_branch
    %9 = sbr.rel (0) target = $region5
  $region4: #{ssp_forward.13} parent=0 // pred_region
    _
  $region5: #{ssp_forward.13} parent=0 // pred_fallthru
    _
  // Predicated region
  $region6: #{ssp_forward.13} parent=0 // pred_check
    _
  $region7: #{ssp_forward.13} parent=0 // pred_check_branch
    %11 = sbr.rel (0) target = $region9
  $region8: #{ssp_forward.13} parent=0 // pred_region
    _
  $region9: #{ssp_forward.13} parent=0 // pred_fallthru
    _
  // Predicated region
  $region10: #{ssp_forward.13} parent=0 // pred_check
    _
  $region11: #{ssp_forward.13} parent=0 // pred_check_branch
    %13 = sbr.rel (0) target = $region13
  $region12: #{ssp_forward.13} parent=0 // pred_region
    _
  $region13: #{ssp_forward.13} parent=0 // pred_fallthru
    _
  %p15 = scmp.eq.s32.totalorder 0, 0
  // Predicated region
  $region14: #{ssp_forward.13} parent=0 // pred_check
    %p16 = pneg %p15
  $region15: #{ssp_forward.13} parent=0 // pred_check_branch
    %18 = sbr.rel (%p16) target = $region17
  $region16: #{ssp_forward.13} parent=0 // pred_region
    %vm19 = vcmask 785408
    %20 = vst.msk [vmem:[#allocation2] sm:$0xff] %vm19, 0.0
    %21 = vst.msk [vmem:[#allocation2 + $0x8] sm:$0xff] %vm19, 0.0
  $region17: #{ssp_forward.13} parent=0 // pred_fallthru
    _
  %v22 = vld [vmem:[#allocation2] sm:$0xff]
  %v23 = vld [vmem:[#allocation2 + $0x8] sm:$0xff]
  %v24 = vld [vmem:[%s0] sm:$0xff]
  %v25 = vld [vmem:[%s0 + $0x8] sm:$0xff]
  %v26 = vpack.c.bf16 %v25, %v24
  %v27 = vld [vmem:[%s1] sm:$0xff]
  %v28 = vld [vmem:[%s1 + $0x8] sm:$0xff]
  %v29 = vld [vmem:[%s1 + $0x10] sm:$0xff]
  %v30 = vld [vmem:[%s1 + $0x18] sm:$0xff]
  %v31 = vld [vmem:[%s1 + $0x20] sm:$0xff]
  %v32 = vld [vmem:[%s1 + $0x28] sm:$0xff]
  %v33 = vld [vmem:[%s1 + $0x30] sm:$0xff]
  %v34 = vld [vmem:[%s1 + $0x38] sm:$0xff]
  %v35 = vld [vmem:[%s1 + $0x40] sm:$0xff]
  %v36 = vld [vmem:[%s1 + $0x48] sm:$0xff]
  %v37 = vld [vmem:[%s1 + $0x50] sm:$0xff]
  %v38 = vld [vmem:[%s1 + $0x58] sm:$0xff]
  %v39 = vpack.c.bf16 %v28, %v27
  %v40 = vpack.c.bf16 %v30, %v29
  %v41 = vpack.c.bf16 %v32, %v31
  %v42 = vpack.c.bf16 %v34, %v33
  %v43 = vpack.c.bf16 %v36, %v35
  %v44 = vpack.c.bf16 %v38, %v37
  %vm45 = vcmask 261120
  %v47 = vsel %vm45, %v26, 0
  %v50 = vsel %vm45, %v39, 0
  %v53 = vsel %vm45, %v40, 0
  %v56 = vsel %vm45, %v41, 0
  %v59 = vsel %vm45, %v42, 0
  %v62 = vsel %vm45, %v43, 0
  %v65 = vsel %vm45, %v44, 0
  %67 = vmatprep.subr.bf16.mxu0 0
  %68 = vmatpush1.bf16.xpose.msra.mxu0 0
  %69 = vmatprep.subr.bf16.mxu0 0
  %70 = vmatpush1.bf16.xpose.msra.mxu0 0
  %71 = vmatprep.subr.bf16.mxu0 0
  %72 = vmatpush1.bf16.xpose.msra.mxu0 %v65
  %73 = vmatprep.subr.bf16.mxu0 0
  %74 = vmatpush1.bf16.xpose.msra.mxu0 %v62
  %75 = vmatprep.subr.bf16.mxu0 0
  %76 = vmatpush1.bf16.xpose.msra.mxu0 %v59
  %77 = vmatprep.subr.bf16.mxu0 0
  %78 = vmatpush1.bf16.xpose.msra.mxu0 %v56
  %79 = vmatprep.subr.bf16.mxu0 0
  %80 = vmatpush1.bf16.xpose.msra.mxu0 %v53
  %81 = vmatprep.subr.bf16.mxu0 0
  %82 = vmatpush1.bf16.xpose.msra.mxu0 %v50
  %83 = vmatprep.subr.bf16.mxu0 0
  %84 = vmatpush2.bf16.xpose.msra.mxu0 0
  %85 = vmatprep.subr.bf16.mxu0 0
  %86 = vmatpush2.bf16.xpose.msra.mxu0 0
  %87 = vmatprep.subr.bf16.mxu0 0
  %88 = vmatpush2.bf16.xpose.msra.mxu0 0
  %89 = vmatprep.subr.bf16.mxu0 0
  %90 = vmatpush2.bf16.xpose.msra.mxu0 0
  %91 = vmatprep.subr.bf16.mxu0 0
  %92 = vmatpush2.bf16.xpose.msra.mxu0 0
  %93 = vmatprep.subr.bf16.mxu0 0
  %94 = vmatpush2.bf16.xpose.msra.mxu0 0
  %95 = vmatprep.subr.bf16.mxu0 0
  %96 = vmatpush2.bf16.xpose.msra.mxu0 0
  %97 = vmatprep.subr.bf16.mxu0 0
  %98 = vmatpush2.bf16.xpose.msra.mxu0 0
  %99 = vmatprep.mubr.bf16.mxu0 0
  %100 = vmatmul.mubr.bf16.gmra.mxu0 %v47
  %v101 = vpop.f32.mrf.mxu0
  %v102 = vadd.f32 0.0, %v101
  %v103 = vpop.f32.mrf.mxu0
  %v104 = vpop.f32.mrf.mxu0
  %v105 = vadd.f32 0.0, %v104
  %v106 = vpop.f32.mrf.mxu0
  %107 = vdwg.mxu0
  %v108 = vadd.f32 %v22, %v102
  %v109 = vadd.f32 %v23, %v105
  %vm110 = vcmask 785408
  %111 = vst.msk [vmem:[#allocation2] sm:$0xff] %vm110, %v108
  %112 = vst.msk [vmem:[#allocation2 + $0x8] sm:$0xff] %vm110, %v109
  // Predicated region
  $region18: #{ssp_forward.13} parent=0 // pred_check
    %p113 = pneg %p15
  $region19: #{ssp_forward.13} parent=0 // pred_check_branch
    %115 = sbr.rel (%p113) target = $region21
  $region20: #{ssp_forward.13} parent=0 // pred_region
    %v116 = vld [vmem:[#allocation2] sm:$0xff]
    %v117 = vld [vmem:[#allocation2 + $0x8] sm:$0xff]
    %v118 = vld [vmem:[%s2] sm:$0x1]
    %v120 = vlaneseq
    %v121 = vshrl.u32 %v120, 7
    %v122 = vsub.s32 0, %v121
    %v123 = vrot.slane %v118, %v122
    %v125 = vadd.f32 %v116, %v123
    %v126 = vadd.f32 %v117, %v123
    %127 = vst.msk [vmem:[%s3] sm:$0xff] %vm110, %v125
    %128 = vst.msk [vmem:[%s3 + $0x8] sm:$0xff] %vm110, %v126
  $region21: #{ssp_forward.13} parent=0 // pred_fallthru
    _
  // Predicated region
  $region22: #{ssp_forward.13} parent=0 // pred_check
    _
  $region23: #{ssp_forward.13} parent=0 // pred_check_branch
    %130 = sbr.rel (0) target = $region25
  $region24: #{ssp_forward.13} parent=0 // pred_region
    _
  $region25: #{ssp_forward.13} parent=0 // pred_fallthru
    _
  // Predicated region
  $region26: #{ssp_forward.13} parent=0 // pred_check
    _
  $region27: #{ssp_forward.13} parent=0 // pred_check_branch
    %132 = sbr.rel (0) target = $region29
  $region28: #{ssp_forward.13} parent=0 // pred_region
    _
  $region29: #{ssp_forward.13} parent=0 // pred_fallthru
    _

// kernel: ssp_forward.15
$region0: #{ssp_forward.15}
  #allocation0 [shape = 'u32[]', space=smem, size = 0x4, offset = 0x4, fixed_abs, tag = 'smem constant byte address 0x4 - core index']
  #allocation1 [shape = 'u32[144,128]{1,0:T(1,128)}', space=vmem, size = 0x12000, scoped, tag = 'internal scratch']
  #allocation2 [shape = 'f32[16,32]{1,0:T(8,128)}', space=vmem, size = 0x2000, scoped, tag = 'scratch operand']
  %s0 = inlined_call_operand.vmem [shape: f32[16,32], index: 0, kind: input, shape index: {}]
  %s1 = inlined_call_operand.vmem [shape: f32[32,32], index: 1, kind: input, shape index: {}]
  %s2 = inlined_call_operand.vmem [shape: f32[1,32], index: 2, kind: input, shape index: {}]
  %s3 = inlined_call_operand.vmem [shape: f32[16,32], index: 3, kind: input, shape index: {}]
  %s4 = inlined_call_operand.vmem [shape: f32[1,32], index: 4, kind: input, shape index: {}]
  %s5 = inlined_call_operand.vmem [shape: f32[1,32], index: 5, kind: input, shape index: {}]
  %s6 = inlined_call_operand.vmem [shape: f32[16,32], index: 6, kind: output, shape index: {}]
  %s7 = sld [smem:[#allocation0]]
  $region42: #{ssp_forward.15} parent=0
    _
  %s9 = ssub.s32 1, %s7
  %s10 = scalar_select 0, %s9, %s7
  // Predicated region
  $region2: #{ssp_forward.15} parent=0 // pred_check
    _
  $region3: #{ssp_forward.15} parent=0 // pred_check_branch
    %12 = sbr.rel (0) target = $region5
  $region4: #{ssp_forward.15} parent=0 // pred_region
    _
  $region5: #{ssp_forward.15} parent=0 // pred_fallthru
    _
  // Predicated region
  $region6: #{ssp_forward.15} parent=0 // pred_check
    _
  $region7: #{ssp_forward.15} parent=0 // pred_check_branch
    %14 = sbr.rel (0) target = $region9
  $region8: #{ssp_forward.15} parent=0 // pred_region
    _
  $region9: #{ssp_forward.15} parent=0 // pred_fallthru
    _
  // Predicated region
  $region10: #{ssp_forward.15} parent=0 // pred_check
    _
  $region11: #{ssp_forward.15} parent=0 // pred_check_branch
    %16 = sbr.rel (0) target = $region13
  $region12: #{ssp_forward.15} parent=0 // pred_region
    _
  $region13: #{ssp_forward.15} parent=0 // pred_fallthru
    _
  // Predicated region
  $region14: #{ssp_forward.15} parent=0 // pred_check
    _
  $region15: #{ssp_forward.15} parent=0 // pred_check_branch
    %18 = sbr.rel (0) target = $region17
  $region16: #{ssp_forward.15} parent=0 // pred_region
    _
  $region17: #{ssp_forward.15} parent=0 // pred_fallthru
    _
  // Predicated region
  $region18: #{ssp_forward.15} parent=0 // pred_check
    _
  $region19: #{ssp_forward.15} parent=0 // pred_check_branch
    %20 = sbr.rel (0) target = $region21
  $region20: #{ssp_forward.15} parent=0 // pred_region
    _
  $region21: #{ssp_forward.15} parent=0 // pred_fallthru
    _
  // Predicated region
  $region22: #{ssp_forward.15} parent=0 // pred_check
    _
  $region23: #{ssp_forward.15} parent=0 // pred_check_branch
    %22 = sbr.rel (0) target = $region25
  $region24: #{ssp_forward.15} parent=0 // pred_region
    _
  $region25: #{ssp_forward.15} parent=0 // pred_fallthru
    _
  %p24 = scmp.eq.s32.totalorder 0, 0
  // Predicated region
  $region26: #{ssp_forward.15} parent=0 // pred_check
    %p25 = pneg %p24
  $region27: #{ssp_forward.15} parent=0 // pred_check_branch
    %27 = sbr.rel (%p25) target = $region29
  $region28: #{ssp_forward.15} parent=0 // pred_region
    %vm28 = vcmask 261120
    %29 = vst.msk [vmem:[#allocation2] sm:$0xff] %vm28, 0.0
    %30 = vst.msk [vmem:[#allocation2 + $0x8] sm:$0xff] %vm28, 0.0
  $region29: #{ssp_forward.15} parent=0 // pred_fallthru
    _
  %v31 = vld [vmem:[#allocation2] sm:$0xff]
  %v32 = vld [vmem:[#allocation2 + $0x8] sm:$0xff]
  %v33 = vld [vmem:[%s0] sm:$0xff]
  %v34 = vld [vmem:[%s0 + $0x8] sm:$0xff]
  %v35 = vpack.c.bf16 %v34, %v33
  %v36 = vld [vmem:[%s1] sm:$0xff]
  %v37 = vld [vmem:[%s1 + $0x8] sm:$0xff]
  %v38 = vld [vmem:[%s1 + $0x10] sm:$0xff]
  %v39 = vld [vmem:[%s1 + $0x18] sm:$0xff]
  %v40 = vpack.c.bf16 %v37, %v36
  %v41 = vpack.c.bf16 %v39, %v38
  %vm42 = vcmask 261120
  %v44 = vsel %vm42, %v35, 0
  %v47 = vsel %vm42, %v40, 0
  %v50 = vsel %vm42, %v41, 0
  %52 = vmatprep.subr.bf16.mxu0 0
  %53 = vmatpush1.bf16.xpose.msra.mxu0 0
  %54 = vmatprep.subr.bf16.mxu0 0
  %55 = vmatpush1.bf16.xpose.msra.mxu0 0
  %56 = vmatprep.subr.bf16.mxu0 0
  %57 = vmatpush1.bf16.xpose.msra.mxu0 0
  %58 = vmatprep.subr.bf16.mxu0 0
  %59 = vmatpush1.bf16.xpose.msra.mxu0 0
  %60 = vmatprep.subr.bf16.mxu0 0
  %61 = vmatpush1.bf16.xpose.msra.mxu0 0
  %62 = vmatprep.subr.bf16.mxu0 0
  %63 = vmatpush1.bf16.xpose.msra.mxu0 0
  %64 = vmatprep.subr.bf16.mxu0 0
  %65 = vmatpush1.bf16.xpose.msra.mxu0 %v50
  %66 = vmatprep.subr.bf16.mxu0 0
  %67 = vmatpush1.bf16.xpose.msra.mxu0 %v47
  %68 = vmatprep.subr.bf16.mxu0 0
  %69 = vmatpush2.bf16.xpose.msra.mxu0 0
  %70 = vmatprep.subr.bf16.mxu0 0
  %71 = vmatpush2.bf16.xpose.msra.mxu0 0
  %72 = vmatprep.subr.bf16.mxu0 0
  %73 = vmatpush2.bf16.xpose.msra.mxu0 0
  %74 = vmatprep.subr.bf16.mxu0 0
  %75 = vmatpush2.bf16.xpose.msra.mxu0 0
  %76 = vmatprep.subr.bf16.mxu0 0
  %77 = vmatpush2.bf16.xpose.msra.mxu0 0
  %78 = vmatprep.subr.bf16.mxu0 0
  %79 = vmatpush2.bf16.xpose.msra.mxu0 0
  %80 = vmatprep.subr.bf16.mxu0 0
  %81 = vmatpush2.bf16.xpose.msra.mxu0 0
  %82 = vmatprep.subr.bf16.mxu0 0
  %83 = vmatpush2.bf16.xpose.msra.mxu0 0
  %84 = vmatprep.mubr.bf16.mxu0 0
  %85 = vmatmul.mubr.bf16.gmra.mxu0 %v44
  %v86 = vpop.f32.mrf.mxu0
  %v87 = vadd.f32 0.0, %v86
  %v88 = vpop.f32.mrf.mxu0
  %v89 = vpop.f32.mrf.mxu0
  %v90 = vadd.f32 0.0, %v89
  %v91 = vpop.f32.mrf.mxu0
  %92 = vdwg.mxu0
  %v93 = vadd.f32 %v31, %v87
  %v94 = vadd.f32 %v32, %v90
  %95 = vst.msk [vmem:[#allocation2] sm:$0xff] %vm42, %v93
  %96 = vst.msk [vmem:[#allocation2 + $0x8] sm:$0xff] %vm42, %v94
  // Predicated region
  $region30: #{ssp_forward.15} parent=0 // pred_check
    %p97 = pneg %p24
  $region31: #{ssp_forward.15} parent=0 // pred_check_branch
    %99 = sbr.rel (%p97) target = $region33
  $region32: #{ssp_forward.15} parent=0 // pred_region
    %v100 = vld [vmem:[#allocation2] sm:$0xff]
    %v101 = vld [vmem:[#allocation2 + $0x8] sm:$0xff]
    %v102 = vld [vmem:[%s2] sm:$0x1]
    %v104 = vlaneseq
    %v105 = vshrl.u32 %v104, 7
    %v106 = vsub.s32 0, %v105
    %v107 = vrot.slane %v102, %v106
    %v109 = vadd.f32 %v100, %v107
    %v110 = vadd.f32 %v101, %v107
    %v111 = vld [vmem:[%s3] sm:$0xff]
    %v112 = vld [vmem:[%s3 + $0x8] sm:$0xff]
    %v113 = vadd.f32 %v109, %v111
    %v114 = vadd.f32 %v110, %v112
    %v115 = vsel %vm42, %v113, 0.0
    %116 = vadd.xlane.f32.xlu0 %v115
    %v117 = vpop.xlane.xlu0 %116
    %v118 = vsel %vm42, %v114, 0.0
    %119 = vadd.xlane.f32.xlu0 %v118
    %v120 = vpop.xlane.xlu0 %119
    %v121 = vrcp.pop 32.0
    %v122 = vmul.f32 %v117, %v121
    %v123 = vmul.f32 %v120, %v121
    %v124 = vsub.f32 %v113, %v122
    %v125 = vsub.f32 %v114, %v123
    %v126 = vmul.f32 %v124, %v124
    %v127 = vmul.f32 %v125, %v125
    %v128 = vsel %vm42, %v126, 0.0
    %129 = vadd.xlane.f32.xlu0 %v128
    %v130 = vpop.xlane.xlu0 %129
    %v131 = vsel %vm42, %v127, 0.0
    %132 = vadd.xlane.f32.xlu0 %v131
    %v133 = vpop.xlane.xlu0 %132
    %v134 = vmul.f32 %v130, %v121
    %v135 = vmul.f32 %v133, %v121
    %v136 = vadd.f32 %v134, 1e-06
    %v137 = vadd.f32 %v135, 1e-06
    %v138 = vrsqrt.pop %v136
    %v139 = vrsqrt.pop %v137
    %v140 = vmul.f32 %v124, %v138
    %v141 = vmul.f32 %v125, %v139
    %v142 = vld [vmem:[%s4] sm:$0x1]
    %v144 = vlaneseq
    %v145 = vshrl.u32 %v144, 7
    %v146 = vsub.s32 0, %v145
    %v147 = vrot.slane %v142, %v146
    %v149 = vmul.f32 %v140, %v147
    %v150 = vmul.f32 %v141, %v147
    %v151 = vld [vmem:[%s5] sm:$0x1]
    %v153 = vlaneseq
    %v154 = vshrl.u32 %v153, 7
    %v155 = vsub.s32 0, %v154
    %v156 = vrot.slane %v151, %v155
    %v158 = vadd.f32 %v149, %v156
    %v159 = vadd.f32 %v150, %v156
    %160 = vst.msk [vmem:[%s6] sm:$0xff] %vm42, %v158
    %161 = vst.msk [vmem:[%s6 + $0x8] sm:$0xff] %vm42, %v159
  $region33: #{ssp_forward.15} parent=0 // pred_fallthru
    _
  // Predicated region
  $region34: #{ssp_forward.15} parent=0 // pred_check
    _
  $region35: #{ssp_forward.15} parent=0 // pred_check_branch
    %163 = sbr.rel (0) target = $region37
  $region36: #{ssp_forward.15} parent=0 // pred_region
    _
  $region37: #{ssp_forward.15} parent=0 // pred_fallthru
    _
  // Predicated region
  $region38: #{ssp_forward.15} parent=0 // pred_check
    _
  $region39: #{ssp_forward.15} parent=0 // pred_check_branch
    %165 = sbr.rel (0) target = $region41
  $region40: #{ssp_forward.15} parent=0 // pred_region
    _
  $region41: #{ssp_forward.15} parent=0 // pred_fallthru
    _

// kernel: ssp_forward.14
$region0: #{ssp_forward.14}
  #allocation0 [shape = 'u32[]', space=smem, size = 0x4, offset = 0x4, fixed_abs, tag = 'smem constant byte address 0x4 - core index']
  #allocation1 [shape = 'u32[144,128]{1,0:T(1,128)}', space=vmem, size = 0x12000, scoped, tag = 'internal scratch']
  %s0 = inlined_call_operand.vmem [shape: s32[2,1,8], index: 0, kind: input, shape index: {}]
  %s1 = inlined_call_operand.vmem [shape: f32[2,8,96], index: 1, kind: input, shape index: {}]
  %s2 = inlined_call_operand.vmem [shape: f32[2,8,32], index: 2, kind: output, shape index: {}]
  %s3 = sld [smem:[#allocation0]]
  $region41: #{ssp_forward.14} parent=0
    _
  %s5 = ssub.s32 1, %s3
  %s6 = scalar_select 0, %s5, %s3
  loop: start=0, step=1, limit=4
  $region2: #{ssp_forward.14} parent=0 // loop_pre_header
    _
  $region3: #{ssp_forward.14} parent=0 // loop_header
    %s8 = sphi 0, %s12
    %p9 = scmp.ge.s32.totalorder %s8, 4
    %s18 = sphi 0, %s20
    %s21 = sphi 0, %s18
    %s22 = sphi 0, %s21
    %s38 = sphi 0, %s22
    %s44 = sphi 0, %s46
    %s47 = sphi 0, %s44
    %s48 = sphi 0, %s47
    %s64 = sphi 0, %s48
    %s70 = sphi 0, %s72
    %s73 = sphi 0, %s70
    %s74 = sphi 0, %s73
    %s90 = sphi 0, %s74
  $region4: #{ssp_forward.14} parent=0 // loop_header_branch
    %11 = sbr.rel (%p9) target = $region8
  $region5: #{ssp_forward.14} parent=0 // loop_body
    %s13 = ssub.s32 %s8, 1
    %s14 = ssub.s32 %s8, 2
    %s15 = sadd.s32 %s8, 1
    %s16 = ssub.s32 %s8, %s15
    %p17 = scmp.eq.s32.totalorder %s16, 0
    %s19 = sadd.s32 %s18, 1
    %s20 = scalar_select %p17, %s18, %s19
    %p23 = pneg %p17
    %p24 = scmp.eq.s32.totalorder %s8, 1
    %p25 = por %p23, %p24
    %p26 = scmp.ne.s32.totalorder %s18, %s21
    %p27 = scmp.eq.s32.totalorder %s8, 0
    %p28 = por %p26, %p27
    %p29 = scmp.ne.s32.totalorder %s18, %s21
    %p30 = scmp.eq.s32.totalorder %s13, 1
    %p31 = por %p29, %p30
    %p32 = scmp.ne.s32.totalorder %s21, %s22
    %p33 = scmp.eq.s32.totalorder %s13, 0
    %p34 = por %p32, %p33
    %p35 = scmp.ne.s32.totalorder %s21, %s22
    %p36 = scmp.eq.s32.totalorder %s14, 1
    %p37 = por %p35, %p36
    %p39 = scmp.ne.s32.totalorder %s22, %s38
    %p40 = scmp.eq.s32.totalorder %s14, 0
    %p41 = por %p39, %p40
    %s42 = ssub.s32 %s8, %s15
    %p43 = scmp.eq.s32.totalorder %s42, 0
    %s45 = sadd.s32 %s44, 1
    %s46 = scalar_select %p43, %s44, %s45
    %p49 = pneg %p43
    %p50 = scmp.eq.s32.totalorder %s8, 1
    %p51 = por %p49, %p50
    %p52 = scmp.ne.s32.totalorder %s44, %s47
    %p53 = scmp.eq.s32.totalorder %s8, 0
    %p54 = por %p52, %p53
    %p55 = scmp.ne.s32.totalorder %s44, %s47
    %p56 = scmp.eq.s32.totalorder %s13, 1
    %p57 = por %p55, %p56
    %p58 = scmp.ne.s32.totalorder %s47, %s48
    %p59 = scmp.eq.s32.totalorder %s13, 0
    %p60 = por %p58, %p59
    %p61 = scmp.ne.s32.totalorder %s47, %s48
    %p62 = scmp.eq.s32.totalorder %s14, 1
    %p63 = por %p61, %p62
    %p65 = scmp.ne.s32.totalorder %s48, %s64
    %p66 = scmp.eq.s32.totalorder %s14, 0
    %p67 = por %p65, %p66
    %s68 = ssub.s32 %s8, %s15
    %p69 = scmp.eq.s32.totalorder %s68, 0
    %s71 = sadd.s32 %s70, 1
    %s72 = scalar_select %p69, %s70, %s71
    %p75 = pneg %p69
    %p76 = scmp.eq.s32.totalorder %s8, 1
    %p77 = por %p75, %p76
    %p78 = scmp.ne.s32.totalorder %s70, %s73
    %p79 = scmp.eq.s32.totalorder %s8, 0
    %p80 = por %p78, %p79
    %p81 = scmp.ne.s32.totalorder %s70, %s73
    %p82 = scmp.eq.s32.totalorder %s13, 1
    %p83 = por %p81, %p82
    %p84 = scmp.ne.s32.totalorder %s73, %s74
    %p85 = scmp.eq.s32.totalorder %s13, 0
    %p86 = por %p84, %p85
    %p87 = scmp.ne.s32.totalorder %s73, %s74
    %p88 = scmp.eq.s32.totalorder %s14, 1
    %p89 = por %p87, %p88
    %p91 = scmp.ne.s32.totalorder %s74, %s90
    %p92 = scmp.eq.s32.totalorder %s14, 0
    %p93 = por %p91, %p92
    %p94 = scmp.le.s32.totalorder 1, %s8
    %p95 = scmp.lt.s32.totalorder %s8, 3
    %p96 = pnand %p94, %p95
    %p97 = pneg %p96
    // Predicated region
    $region9: #{ssp_forward.14} parent=5 // pred_check
      _
    $region10: #{ssp_forward.14} parent=5 // pred_check_branch
      %99 = sbr.rel (%p96) target = $region12
    $region11: #{ssp_forward.14} parent=5 // pred_region
      %s100 = ssub.s32 %s8, 1
    $region12: #{ssp_forward.14} parent=5 // pred_fallthru
      _
    %p101 = scmp.lt.s32.totalorder %s8, 2
    // Predicated region
    $region13: #{ssp_forward.14} parent=5 // pred_check
      %p102 = pneg %p101
    $region14: #{ssp_forward.14} parent=5 // pred_check_branch
      %104 = sbr.rel (%p102) target = $region16
    $region15: #{ssp_forward.14} parent=5 // pred_region
      // Predicated region
      $region17: #{ssp_forward.14} parent=15 // pred_check
        %p105 = pneg %p28
      $region18: #{ssp_forward.14} parent=15 // pred_check_branch
        %107 = sbr.rel (%p105) target = $region20
      $region19: #{ssp_forward.14} parent=15 // pred_region
        %p108 = scmp.lt.s32.totalorder %s8, 1
        %s109 = scalar_select %p108, %s8, 1
        %s110 = scalar_lea.vmem %s0, %s109
      $region20: #{ssp_forward.14} parent=15 // pred_fallthru
        _
      // Predicated region
      $region21: #{ssp_forward.14} parent=15 // pred_check
        %p111 = pneg %p54
      $region22: #{ssp_forward.14} parent=15 // pred_check_branch
        %113 = sbr.rel (%p111) target = $region24
      $region23: #{ssp_forward.14} parent=15 // pred_region
        %p114 = scmp.lt.s32.totalorder %s8, 1
        %s115 = scalar_select %p114, %s8, 1
        %s116 = smul.addr %s115, 8
        %s117 = scalar_lea.vmem %s1, %s116
      $region24: #{ssp_forward.14} parent=15 // pred_fallthru
        _
    $region16: #{ssp_forward.14} parent=5 // pred_fallthru
      _
    %p118 = scmp.le.s32.totalorder 1, %s8
    %p119 = scmp.lt.s32.totalorder %s8, 3
    %p120 = pnand %p118, %p119
    %p121 = pneg %p120
    // Predicated region
    $region25: #{ssp_forward.14} parent=5 // pred_check
      _
    $region26: #{ssp_forward.14} parent=5 // pred_check_branch
      %123 = sbr.rel (%p120) target = $region28
    $region27: #{ssp_forward.14} parent=5 // pred_region
      %s124 = ssub.s32 %s8, 1
      %p125 = scmp.lt.s32.totalorder %s13, 1
      %s126 = scalar_select %p125, %s13, 1
      %s127 = scalar_lea.vmem %s0, %s126
      %p128 = pneg %p34
      %p129 = pneg %p31
      %p130 = scmp.lt.s32.totalorder %s13, 1
      %s131 = scalar_select %p130, %s13, 1
      %s132 = smul.addr %s131, 8
      %s133 = scalar_lea.vmem %s1, %s132
      %p134 = pneg %p60
      %p135 = pneg %p57
      %p136 = pneg %p86
      %p137 = pneg %p83
      %p138 = scmp.lt.s32.totalorder %s13, 1
      %s139 = scalar_select %p138, %s13, 1
      %s140 = smul.addr %s139, 8
      %s141 = scalar_lea.vmem %s2, %s140
      %p142 = scmp.lt.s32.totalorder %s13, 1
      %s143 = scalar_select %p142, %s13, 1
      %s144 = scalar_lea.vmem %s0, %s143
      %p145 = scmp.lt.s32.totalorder %s13, 1
      %s146 = scalar_select %p145, %s13, 1
      %s147 = smul.addr %s146, 8
      %s148 = scalar_lea.vmem %s1, %s147
      %p149 = scmp.lt.s32.totalorder %s13, 1
      %s150 = scalar_select %p149, %s13, 1
      %s151 = smul.addr %s150, 8
      %s152 = scalar_lea.vmem %s2, %s151
      %v154 = vld [vmem:[%s148] sm:$0xff]
      %v155 = vld [vmem:[%s144] sm:$0x1]
      %vm156 = vcmp.ne.s32.totalorder %v155, 0
      %v157 = vlaneseq
      %v158 = vshrl.u32 %v157, 7
      %v159 = vlaneseq
      %v160 = vand.u32 %v159, 127
      %vm161 = vcmp.ge.s32.totalorder %v158, %v160
      %v162 = vsel %vm156, 1, 0
      %v163 = vlaneseq
      %v164 = vshrl.u32 %v163, 7
      %v165 = vsub.s32 0, %v164
      %v166 = vrot.slane %v162, %v165
      %vm167 = vcmp.eq.s32.totalorder %v166, 1
      %vm168 = vmand %vm161, %vm167
      %v169 = vmul.f32 %v154, 0.25
      %v170 = vpack.c.bf16 %v169, %v169
      %v171 = vpack.c.bf16 %v154, %v154
      %173 = vrot.lane.b32.xlu0 %v171, 96
      %v174 = vpop.permute.xlu0 %173
      %vm175 = vcmask 130048
      %v177 = vsel %vm175, %v170, 0
      %v180 = vsel %vm175, %v174, 0
      %182 = vmatprep.subr.bf16.mxu0 0
      %183 = vmatpush1.bf16.xpose.msra.mxu0 0
      %184 = vmatprep.subr.bf16.mxu0 0
      %185 = vmatpush1.bf16.xpose.msra.mxu0 0
      %186 = vmatprep.subr.bf16.mxu0 0
      %187 = vmatpush1.bf16.xpose.msra.mxu0 0
      %188 = vmatprep.subr.bf16.mxu0 0
      %189 = vmatpush1.bf16.xpose.msra.mxu0 0
      %190 = vmatprep.subr.bf16.mxu0 0
      %191 = vmatpush1.bf16.xpose.msra.mxu0 0
      %192 = vmatprep.subr.bf16.mxu0 0
      %193 = vmatpush1.bf16.xpose.msra.mxu0 0
      %194 = vmatprep.subr.bf16.mxu0 0
      %195 = vmatpush1.bf16.xpose.msra.mxu0 0
      %196 = vmatprep.subr.bf16.mxu0 0
      %197 = vmatpush1.bf16.xpose.msra.mxu0 %v180
      %198 = vmatprep.subr.bf16.mxu0 0
      %199 = vmatpush2.bf16.xpose.msra.mxu0 0
      %200 = vmatprep.subr.bf16.mxu0 0
      %201 = vmatpush2.bf16.xpose.msra.mxu0 0
      %202 = vmatprep.subr.bf16.mxu0 0
      %203 = vmatpush2.bf16.xpose.msra.mxu0 0
      %204 = vmatprep.subr.bf16.mxu0 0
      %205 = vmatpush2.bf16.xpose.msra.mxu0 0
      %206 = vmatprep.subr.bf16.mxu0 0
      %207 = vmatpush2.bf16.xpose.msra.mxu0 0
      %208 = vmatprep.subr.bf16.mxu0 0
      %209 = vmatpush2.bf16.xpose.msra.mxu0 0
      %210 = vmatprep.subr.bf16.mxu0 0
      %211 = vmatpush2.bf16.xpose.msra.mxu0 0
      %212 = vmatprep.subr.bf16.mxu0 0
      %213 = vmatpush2.bf16.xpose.msra.mxu0 0
      %214 = vmatprep.mubr.bf16.mxu0 0
      %215 = vmatmul.mubr.bf16.gmra.mxu0 %v177
      %v216 = vpop.f32.mrf.mxu0
      %v217 = vadd.f32 0.0, %v216
      %v218 = vpop.f32.mrf.mxu0
      %v219 = vpop.f32.mrf.mxu0
      %v220 = vpop.f32.mrf.mxu0
      %221 = vdwg.mxu0
      %v222 = vsel %vm168, %v217, -1e+09
      %vm223 = vcmask 64512
      %v224 = vsel %vm223, %v222, -inf
      %225 = vmax.xlane.f32.xlu0 %v224
      %v226 = vpop.xlane.xlu0 %225
      %v227 = vsub.f32 %v222, %v226
      %v228 = vmul.f32 %v227, 1.442695
      %v229 = vpow.pop %v228
      %v230 = vsel %vm223, %v229, 0.0
      %231 = vadd.xlane.f32.xlu0 %v230
      %v232 = vpop.xlane.xlu0 %231
      %v233 = vrcp.pop %v232
      %v234 = vmul.f32 %v229, %v233
      %v235 = vpack.c.bf16 %v234, %v234
      %236 = vrot.lane.b32.xlu0 %v171, 64
      %v237 = vpop.permute.xlu0 %236
      %v239 = vsel %vm223, %v235, 0
      %vm241 = vcmask 1043456
      %v243 = vsel %vm241, %v237, 0
      %245 = vmatprep.subr.bf16.mxu0 0
      %246 = vmatpush1.bf16.msra.mxu0 0
      %247 = vmatprep.subr.bf16.mxu0 0
      %248 = vmatpush1.bf16.msra.mxu0 0
      %249 = vmatprep.subr.bf16.mxu0 0
      %250 = vmatpush1.bf16.msra.mxu0 0
      %251 = vmatprep.subr.bf16.mxu0 0
      %252 = vmatpush1.bf16.msra.mxu0 0
      %253 = vmatprep.subr.bf16.mxu0 0
      %254 = vmatpush1.bf16.msra.mxu0 0
      %255 = vmatprep.subr.bf16.mxu0 0
      %256 = vmatpush1.bf16.msra.mxu0 0
      %257 = vmatprep.subr.bf16.mxu0 0
      %258 = vmatpush1.bf16.msra.mxu0 0
      %259 = vmatprep.subr.bf16.mxu0 0
      %260 = vmatpush1.bf16.msra.mxu0 %v243
      %261 = vmatprep.subr.bf16.mxu0 0
      %262 = vmatpush2.bf16.msra.mxu0 0
      %263 = vmatprep.subr.bf16.mxu0 0
      %264 = vmatpush2.bf16.msra.mxu0 0
      %265 = vmatprep.subr.bf16.mxu0 0
      %266 = vmatpush2.bf16.msra.mxu0 0
      %267 = vmatprep.subr.bf16.mxu0 0
      %268 = vmatpush2.bf16.msra.mxu0 0
      %269 = vmatprep.subr.bf16.mxu0 0
      %270 = vmatpush2.bf16.msra.mxu0 0
      %271 = vmatprep.subr.bf16.mxu0 0
      %272 = vmatpush2.bf16.msra.mxu0 0
      %273 = vmatprep.subr.bf16.mxu0 0
      %274 = vmatpush2.bf16.msra.mxu0 0
      %275 = vmatprep.subr.bf16.mxu0 0
      %276 = vmatpush2.bf16.msra.mxu0 0
      %277 = vmatprep.mubr.bf16.mxu0 0
      %278 = vmatmul.mubr.bf16.gmra.mxu0 %v239
      %v279 = vpop.f32.mrf.mxu0
      %v280 = vadd.f32 0.0, %v279
      %v281 = vpop.f32.mrf.mxu0
      %v282 = vpop.f32.mrf.mxu0
      %v283 = vpop.f32.mrf.mxu0
      %284 = vdwg.mxu0
      %286 = vrot.lane.b32.xlu0 %v170, 112
      %v287 = vpop.permute.xlu0 %286
      %288 = vrot.lane.b32.xlu0 %v171, 80
      %v289 = vpop.permute.xlu0 %288
      %v291 = vsel %vm175, %v287, 0
      %v294 = vsel %vm175, %v289, 0
      %296 = vmatprep.subr.bf16.mxu0 0
      %297 = vmatpush1.bf16.xpose.msra.mxu0 0
      %298 = vmatprep.subr.bf16.mxu0 0
      %299 = vmatpush1.bf16.xpose.msra.mxu0 0
      %300 = vmatprep.subr.bf16.mxu0 0
      %301 = vmatpush1.bf16.xpose.msra.mxu0 0
      %302 = vmatprep.subr.bf16.mxu0 0
      %303 = vmatpush1.bf16.xpose.msra.mxu0 0
      %304 = vmatprep.subr.bf16.mxu0 0
      %305 = vmatpush1.bf16.xpose.msra.mxu0 0
      %306 = vmatprep.subr.bf16.mxu0 0
      %307 = vmatpush1.bf16.xpose.msra.mxu0 0
      %308 = vmatprep.subr.bf16.mxu0 0
      %309 = vmatpush1.bf16.xpose.msra.mxu0 0
      %310 = vmatprep.subr.bf16.mxu0 0
      %311 = vmatpush1.bf16.xpose.msra.mxu0 %v294
      %312 = vmatprep.subr.bf16.mxu0 0
      %313 = vmatpush2.bf16.xpose.msra.mxu0 0
      %314 = vmatprep.subr.bf16.mxu0 0
      %315 = vmatpush2.bf16.xpose.msra.mxu0 0
      %316 = vmatprep.subr.bf16.mxu0 0
      %317 = vmatpush2.bf16.xpose.msra.mxu0 0
      %318 = vmatprep.subr.bf16.mxu0 0
      %319 = vmatpush2.bf16.xpose.msra.mxu0 0
      %320 = vmatprep.subr.bf16.mxu0 0
      %321 = vmatpush2.bf16.xpose.msra.mxu0 0
      %322 = vmatprep.subr.bf16.mxu0 0
      %323 = vmatpush2.bf16.xpose.msra.mxu0 0
      %324 = vmatprep.subr.bf16.mxu0 0
      %325 = vmatpush2.bf16.xpose.msra.mxu0 0
      %326 = vmatprep.subr.bf16.mxu0 0
      %327 = vmatpush2.bf16.xpose.msra.mxu0 0
      %328 = vmatprep.mubr.bf16.mxu0 0
      %329 = vmatmul.mubr.bf16.gmra.mxu0 %v291
      %v330 = vpop.f32.mrf.mxu0
      %v331 = vadd.f32 0.0, %v330
      %v332 = vpop.f32.mrf.mxu0
      %v333 = vpop.f32.mrf.mxu0
      %v334 = vpop.f32.mrf.mxu0
      %335 = vdwg.mxu0
      %v336 = vsel %vm168, %v331, -1e+09
      %v337 = vsel %vm223, %v336, -inf
      %338 = vmax.xlane.f32.xlu0 %v337
      %v339 = vpop.xlane.xlu0 %338
      %v340 = vsub.f32 %v336, %v339
      %v341 = vmul.f32 %v340, 1.442695
      %v342 = vpow.pop %v341
      %v343 = vsel %vm223, %v342, 0.0
      %344 = vadd.xlane.f32.xlu0 %v343
      %v345 = vpop.xlane.xlu0 %344
      %v346 = vrcp.pop %v345
      %v347 = vmul.f32 %v342, %v346
      %v348 = vpack.c.bf16 %v347, %v347
      %349 = vrot.lane.b32.xlu0 %v171, 48
      %v350 = vpop.permute.xlu0 %349
      %v352 = vsel %vm223, %v348, 0
      %v355 = vsel %vm241, %v350, 0
      %357 = vmatprep.subr.bf16.mxu0 0
      %358 = vmatpush1.bf16.msra.mxu0 0
      %359 = vmatprep.subr.bf16.mxu0 0
      %360 = vmatpush1.bf16.msra.mxu0 0
      %361 = vmatprep.subr.bf16.mxu0 0
      %362 = vmatpush1.bf16.msra.mxu0 0
      %363 = vmatprep.subr.bf16.mxu0 0
      %364 = vmatpush1.bf16.msra.mxu0 0
      %365 = vmatprep.subr.bf16.mxu0 0
      %366 = vmatpush1.bf16.msra.mxu0 0
      %367 = vmatprep.subr.bf16.mxu0 0
      %368 = vmatpush1.bf16.msra.mxu0 0
      %369 = vmatprep.subr.bf16.mxu0 0
      %370 = vmatpush1.bf16.msra.mxu0 0
      %371 = vmatprep.subr.bf16.mxu0 0
      %372 = vmatpush1.bf16.msra.mxu0 %v355
      %373 = vmatprep.subr.bf16.mxu0 0
      %374 = vmatpush2.bf16.msra.mxu0 0
      %375 = vmatprep.subr.bf16.mxu0 0
      %376 = vmatpush2.bf16.msra.mxu0 0
      %377 = vmatprep.subr.bf16.mxu0 0
      %378 = vmatpush2.bf16.msra.mxu0 0
      %379 = vmatprep.subr.bf16.mxu0 0
      %380 = vmatpush2.bf16.msra.mxu0 0
      %381 = vmatprep.subr.bf16.mxu0 0
      %382 = vmatpush2.bf16.msra.mxu0 0
      %383 = vmatprep.subr.bf16.mxu0 0
      %384 = vmatpush2.bf16.msra.mxu0 0
      %385 = vmatprep.subr.bf16.mxu0 0
      %386 = vmatpush2.bf16.msra.mxu0 0
      %387 = vmatprep.subr.bf16.mxu0 0
      %388 = vmatpush2.bf16.msra.mxu0 0
      %389 = vmatprep.mubr.bf16.mxu0 0
      %390 = vmatmul.mubr.bf16.gmra.mxu0 %v352
      %v391 = vpop.f32.mrf.mxu0
      %v392 = vadd.f32 0.0, %v391
      %v393 = vpop.f32.mrf.mxu0
      %v394 = vpop.f32.mrf.mxu0
      %v395 = vpop.f32.mrf.mxu0
      %396 = vdwg.mxu0
      %398 = vrot.lane.b32.xlu0 %v392, 16
      %v399 = vpop.permute.xlu0 %398
      %v401 = vsel %vm175, %v280, %v399
      %vm402 = vcmask 261120
      %403 = vst.msk [vmem:[%s152] sm:$0xff] %vm402, %v401
      %p404 = scmp.lt.s32.totalorder %s13, 1
      %s405 = scalar_select %p404, %s13, 1
      %s406 = smul.addr %s405, 8
      %s407 = scalar_lea.vmem %s2, %s406
      // Predicated region
      $region29: #{ssp_forward.14} parent=27 // pred_check
        %p408 = pneg %p83
      $region30: #{ssp_forward.14} parent=27 // pred_check_branch
        %410 = sbr.rel (%p408) target = $region32
      $region31: #{ssp_forward.14} parent=27 // pred_region
        _
      $region32: #{ssp_forward.14} parent=27 // pred_fallthru
        _
    $region28: #{ssp_forward.14} parent=5 // pred_fallthru
      _
    %p411 = scmp.le.s32.totalorder 2, %s8
    // Predicated region
    $region33: #{ssp_forward.14} parent=5 // pred_check
      %p412 = pneg %p411
    $region34: #{ssp_forward.14} parent=5 // pred_check_branch
      %414 = sbr.rel (%p412) target = $region36
    $region35: #{ssp_forward.14} parent=5 // pred_region
      %s415 = ssub.s32 %s8, 2
      // Predicated region
      $region37: #{ssp_forward.14} parent=35 // pred_check
        %p416 = pneg %p89
      $region38: #{ssp_forward.14} parent=35 // pred_check_branch
        %418 = sbr.rel (%p416) target = $region40
      $region39: #{ssp_forward.14} parent=35 // pred_region
        %p419 = scmp.lt.s32.totalorder %s14, 1
        %s420 = scalar_select %p419, %s14, 1
        %s421 = smul.addr %s420, 8
        %s422 = scalar_lea.vmem %s2, %s421
      $region40: #{ssp_forward.14} parent=35 // pred_fallthru
        _
    $region36: #{ssp_forward.14} parent=5 // pred_fallthru
      _
  $region6: #{ssp_forward.14} parent=0 // loop_footer
    %s12 = sadd.s32 1, %s8
  $region7: #{ssp_forward.14} parent=0 // loop_footer_branch
    %7 = sbr.rel target = $region3
  $region8: #{ssp_forward.14} parent=0 // loop_exit
    _

// kernel: ssp_forward.16
$region0: #{ssp_forward.16}
  #allocation0 [shape = 'u32[]', space=smem, size = 0x4, offset = 0x4, fixed_abs, tag = 'smem constant byte address 0x4 - core index']
  #allocation1 [shape = 'u32[144,128]{1,0:T(1,128)}', space=vmem, size = 0x12000, scoped, tag = 'internal scratch']
  #allocation2 [shape = 'f32[16,64]{1,0:T(8,128)}', space=vmem, size = 0x2000, scoped, tag = 'scratch operand']
  %s0 = inlined_call_operand.vmem [shape: f32[16,32], index: 0, kind: input, shape index: {}]
  %s1 = inlined_call_operand.vmem [shape: f32[64,32], index: 1, kind: input, shape index: {}]
  %s2 = inlined_call_operand.vmem [shape: f32[1,64], index: 2, kind: input, shape index: {}]
  %s3 = inlined_call_operand.vmem [shape: f32[16,64], index: 3, kind: output, shape index: {}]
  %s4 = sld [smem:[#allocation0]]
  $region30: #{ssp_forward.16} parent=0
    _
  %s6 = ssub.s32 1, %s4
  %s7 = scalar_select 0, %s6, %s4
  // Predicated region
  $region2: #{ssp_forward.16} parent=0 // pred_check
    _
  $region3: #{ssp_forward.16} parent=0 // pred_check_branch
    %9 = sbr.rel (0) target = $region5
  $region4: #{ssp_forward.16} parent=0 // pred_region
    _
  $region5: #{ssp_forward.16} parent=0 // pred_fallthru
    _
  // Predicated region
  $region6: #{ssp_forward.16} parent=0 // pred_check
    _
  $region7: #{ssp_forward.16} parent=0 // pred_check_branch
    %11 = sbr.rel (0) target = $region9
  $region8: #{ssp_forward.16} parent=0 // pred_region
    _
  $region9: #{ssp_forward.16} parent=0 // pred_fallthru
    _
  // Predicated region
  $region10: #{ssp_forward.16} parent=0 // pred_check
    _
  $region11: #{ssp_forward.16} parent=0 // pred_check_branch
    %13 = sbr.rel (0) target = $region13
  $region12: #{ssp_forward.16} parent=0 // pred_region
    _
  $region13: #{ssp_forward.16} parent=0 // pred_fallthru
    _
  %p15 = scmp.eq.s32.totalorder 0, 0
  // Predicated region
  $region14: #{ssp_forward.16} parent=0 // pred_check
    %p16 = pneg %p15
  $region15: #{ssp_forward.16} parent=0 // pred_check_branch
    %18 = sbr.rel (%p16) target = $region17
  $region16: #{ssp_forward.16} parent=0 // pred_region
    %vm19 = vcmask 523264
    %20 = vst.msk [vmem:[#allocation2] sm:$0xff] %vm19, 0.0
    %21 = vst.msk [vmem:[#allocation2 + $0x8] sm:$0xff] %vm19, 0.0
  $region17: #{ssp_forward.16} parent=0 // pred_fallthru
    _
  %v22 = vld [vmem:[#allocation2] sm:$0xff]
  %v23 = vld [vmem:[#allocation2 + $0x8] sm:$0xff]
  %v24 = vld [vmem:[%s0] sm:$0xff]
  %v25 = vld [vmem:[%s0 + $0x8] sm:$0xff]
  %v26 = vpack.c.bf16 %v25, %v24
  %v27 = vld [vmem:[%s1] sm:$0xff]
  %v28 = vld [vmem:[%s1 + $0x8] sm:$0xff]
  %v29 = vld [vmem:[%s1 + $0x10] sm:$0xff]
  %v30 = vld [vmem:[%s1 + $0x18] sm:$0xff]
  %v31 = vld [vmem:[%s1 + $0x20] sm:$0xff]
  %v32 = vld [vmem:[%s1 + $0x28] sm:$0xff]
  %v33 = vld [vmem:[%s1 + $0x30] sm:$0xff]
  %v34 = vld [vmem:[%s1 + $0x38] sm:$0xff]
  %v35 = vpack.c.bf16 %v28, %v27
  %v36 = vpack.c.bf16 %v30, %v29
  %v37 = vpack.c.bf16 %v32, %v31
  %v38 = vpack.c.bf16 %v34, %v33
  %vm39 = vcmask 261120
  %v41 = vsel %vm39, %v26, 0
  %v44 = vsel %vm39, %v35, 0
  %v47 = vsel %vm39, %v36, 0
  %v50 = vsel %vm39, %v37, 0
  %v53 = vsel %vm39, %v38, 0
  %55 = vmatprep.subr.bf16.mxu0 0
  %56 = vmatpush1.bf16.xpose.msra.mxu0 0
  %57 = vmatprep.subr.bf16.mxu0 0
  %58 = vmatpush1.bf16.xpose.msra.mxu0 0
  %59 = vmatprep.subr.bf16.mxu0 0
  %60 = vmatpush1.bf16.xpose.msra.mxu0 0
  %61 = vmatprep.subr.bf16.mxu0 0
  %62 = vmatpush1.bf16.xpose.msra.mxu0 0
  %63 = vmatprep.subr.bf16.mxu0 0
  %64 = vmatpush1.bf16.xpose.msra.mxu0 %v53
  %65 = vmatprep.subr.bf16.mxu0 0
  %66 = vmatpush1.bf16.xpose.msra.mxu0 %v50
  %67 = vmatprep.subr.bf16.mxu0 0
  %68 = vmatpush1.bf16.xpose.msra.mxu0 %v47
  %69 = vmatprep.subr.bf16.mxu0 0
  %70 = vmatpush1.bf16.xpose.msra.mxu0 %v44
  %71 = vmatprep.subr.bf16.mxu0 0
  %72 = vmatpush2.bf16.xpose.msra.mxu0 0
  %73 = vmatprep.subr.bf16.mxu0 0
  %74 = vmatpush2.bf16.xpose.msra.mxu0 0
  %75 = vmatprep.subr.bf16.mxu0 0
  %76 = vmatpush2.bf16.xpose.msra.mxu0 0
  %77 = vmatprep.subr.bf16.mxu0 0
  %78 = vmatpush2.bf16.xpose.msra.mxu0 0
  %79 = vmatprep.subr.bf16.mxu0 0
  %80 = vmatpush2.bf16.xpose.msra.mxu0 0
  %81 = vmatprep.subr.bf16.mxu0 0
  %82 = vmatpush2.bf16.xpose.msra.mxu0 0
  %83 = vmatprep.subr.bf16.mxu0 0
  %84 = vmatpush2.bf16.xpose.msra.mxu0 0
  %85 = vmatprep.subr.bf16.mxu0 0
  %86 = vmatpush2.bf16.xpose.msra.mxu0 0
  %87 = vmatprep.mubr.bf16.mxu0 0
  %88 = vmatmul.mubr.bf16.gmra.mxu0 %v41
  %v89 = vpop.f32.mrf.mxu0
  %v90 = vadd.f32 0.0, %v89
  %v91 = vpop.f32.mrf.mxu0
  %v92 = vpop.f32.mrf.mxu0
  %v93 = vadd.f32 0.0, %v92
  %v94 = vpop.f32.mrf.mxu0
  %95 = vdwg.mxu0
  %v96 = vadd.f32 %v22, %v90
  %v97 = vadd.f32 %v23, %v93
  %vm98 = vcmask 523264
  %99 = vst.msk [vmem:[#allocation2] sm:$0xff] %vm98, %v96
  %100 = vst.msk [vmem:[#allocation2 + $0x8] sm:$0xff] %vm98, %v97
  // Predicated region
  $region18: #{ssp_forward.16} parent=0 // pred_check
    %p101 = pneg %p15
  $region19: #{ssp_forward.16} parent=0 // pred_check_branch
    %103 = sbr.rel (%p101) target = $region21
  $region20: #{ssp_forward.16} parent=0 // pred_region
    %v104 = vld [vmem:[#allocation2] sm:$0xff]
    %v105 = vld [vmem:[#allocation2 + $0x8] sm:$0xff]
    %v106 = vld [vmem:[%s2] sm:$0x1]
    %v108 = vlaneseq
    %v109 = vshrl.u32 %v108, 7
    %v110 = vsub.s32 0, %v109
    %v111 = vrot.slane %v106, %v110
    %v113 = vadd.f32 %v104, %v111
    %v114 = vadd.f32 %v105, %v111
    %v115 = vmax.f32 %v113, 0.0
    %v116 = vmax.f32 %v114, 0.0
    %117 = vst.msk [vmem:[%s3] sm:$0xff] %vm98, %v115
    %118 = vst.msk [vmem:[%s3 + $0x8] sm:$0xff] %vm98, %v116
  $region21: #{ssp_forward.16} parent=0 // pred_fallthru
    _
  // Predicated region
  $region22: #{ssp_forward.16} parent=0 // pred_check
    _
  $region23: #{ssp_forward.16} parent=0 // pred_check_branch
    %120 = sbr.rel (0) target = $region25
  $region24: #{ssp_forward.16} parent=0 // pred_region
    _
  $region25: #{ssp_forward.16} parent=0 // pred_fallthru
    _
  // Predicated region
  $region26: #{ssp_forward.16} parent=0 // pred_check
    _
  $region27: #{ssp_forward.16} parent=0 // pred_check_branch
    %122 = sbr.rel (0) target = $region29
  $region28: #{ssp_forward.16} parent=0 // pred_region
    _
  $region29: #{ssp_forward.16} parent=0 // pred_fallthru
    _

// kernel: ssp_forward.17
$region0: #{ssp_forward.17}
  #allocation0 [shape = 'u32[]', space=smem, size = 0x4, offset = 0x4, fixed_abs, tag = 'smem constant byte address 0x4 - core index']
  #allocation1 [shape = 'u32[144,128]{1,0:T(1,128)}', space=vmem, size = 0x12000, scoped, tag = 'internal scratch']
  #allocation2 [shape = 'f32[16,32]{1,0:T(8,128)}', space=vmem, size = 0x2000, scoped, tag = 'scratch operand']
  %s0 = inlined_call_operand.vmem [shape: f32[16,64], index: 0, kind: input, shape index: {}]
  %s1 = inlined_call_operand.vmem [shape: f32[32,64], index: 1, kind: input, shape index: {}]
  %s2 = inlined_call_operand.vmem [shape: f32[1,32], index: 2, kind: input, shape index: {}]
  %s3 = inlined_call_operand.vmem [shape: f32[16,32], index: 3, kind: input, shape index: {}]
  %s4 = inlined_call_operand.vmem [shape: f32[1,32], index: 4, kind: input, shape index: {}]
  %s5 = inlined_call_operand.vmem [shape: f32[1,32], index: 5, kind: input, shape index: {}]
  %s6 = inlined_call_operand.vmem [shape: f32[16,32], index: 6, kind: output, shape index: {}]
  %s7 = sld [smem:[#allocation0]]
  $region42: #{ssp_forward.17} parent=0
    _
  %s9 = ssub.s32 1, %s7
  %s10 = scalar_select 0, %s9, %s7
  // Predicated region
  $region2: #{ssp_forward.17} parent=0 // pred_check
    _
  $region3: #{ssp_forward.17} parent=0 // pred_check_branch
    %12 = sbr.rel (0) target = $region5
  $region4: #{ssp_forward.17} parent=0 // pred_region
    _
  $region5: #{ssp_forward.17} parent=0 // pred_fallthru
    _
  // Predicated region
  $region6: #{ssp_forward.17} parent=0 // pred_check
    _
  $region7: #{ssp_forward.17} parent=0 // pred_check_branch
    %14 = sbr.rel (0) target = $region9
  $region8: #{ssp_forward.17} parent=0 // pred_region
    _
  $region9: #{ssp_forward.17} parent=0 // pred_fallthru
    _
  // Predicated region
  $region10: #{ssp_forward.17} parent=0 // pred_check
    _
  $region11: #{ssp_forward.17} parent=0 // pred_check_branch
    %16 = sbr.rel (0) target = $region13
  $region12: #{ssp_forward.17} parent=0 // pred_region
    _
  $region13: #{ssp_forward.17} parent=0 // pred_fallthru
    _
  // Predicated region
  $region14: #{ssp_forward.17} parent=0 // pred_check
    _
  $region15: #{ssp_forward.17} parent=0 // pred_check_branch
    %18 = sbr.rel (0) target = $region17
  $region16: #{ssp_forward.17} parent=0 // pred_region
    _
  $region17: #{ssp_forward.17} parent=0 // pred_fallthru
    _
  // Predicated region
  $region18: #{ssp_forward.17} parent=0 // pred_check
    _
  $region19: #{ssp_forward.17} parent=0 // pred_check_branch
    %20 = sbr.rel (0) target = $region21
  $region20: #{ssp_forward.17} parent=0 // pred_region
    _
  $region21: #{ssp_forward.17} parent=0 // pred_fallthru
    _
  // Predicated region
  $region22: #{ssp_forward.17} parent=0 // pred_check
    _
  $region23: #{ssp_forward.17} parent=0 // pred_check_branch
    %22 = sbr.rel (0) target = $region25
  $region24: #{ssp_forward.17} parent=0 // pred_region
    _
  $region25: #{ssp_forward.17} parent=0 // pred_fallthru
    _
  %p24 = scmp.eq.s32.totalorder 0, 0
  // Predicated region
  $region26: #{ssp_forward.17} parent=0 // pred_check
    %p25 = pneg %p24
  $region27: #{ssp_forward.17} parent=0 // pred_check_branch
    %27 = sbr.rel (%p25) target = $region29
  $region28: #{ssp_forward.17} parent=0 // pred_region
    %vm28 = vcmask 261120
    %29 = vst.msk [vmem:[#allocation2] sm:$0xff] %vm28, 0.0
    %30 = vst.msk [vmem:[#allocation2 + $0x8] sm:$0xff] %vm28, 0.0
  $region29: #{ssp_forward.17} parent=0 // pred_fallthru
    _
  %v31 = vld [vmem:[#allocation2] sm:$0xff]
  %v32 = vld [vmem:[#allocation2 + $0x8] sm:$0xff]
  %v33 = vld [vmem:[%s0] sm:$0xff]
  %v34 = vld [vmem:[%s0 + $0x8] sm:$0xff]
  %v35 = vpack.c.bf16 %v34, %v33
  %v36 = vld [vmem:[%s1] sm:$0xff]
  %v37 = vld [vmem:[%s1 + $0x8] sm:$0xff]
  %v38 = vld [vmem:[%s1 + $0x10] sm:$0xff]
  %v39 = vld [vmem:[%s1 + $0x18] sm:$0xff]
  %v40 = vpack.c.bf16 %v37, %v36
  %v41 = vpack.c.bf16 %v39, %v38
  %vm42 = vcmask 523264
  %v44 = vsel %vm42, %v35, 0
  %v47 = vsel %vm42, %v40, 0
  %v50 = vsel %vm42, %v41, 0
  %52 = vmatprep.subr.bf16.mxu0 0
  %53 = vmatpush1.bf16.xpose.msra.mxu0 0
  %54 = vmatprep.subr.bf16.mxu0 0
  %55 = vmatpush1.bf16.xpose.msra.mxu0 0
  %56 = vmatprep.subr.bf16.mxu0 0
  %57 = vmatpush1.bf16.xpose.msra.mxu0 0
  %58 = vmatprep.subr.bf16.mxu0 0
  %59 = vmatpush1.bf16.xpose.msra.mxu0 0
  %60 = vmatprep.subr.bf16.mxu0 0
  %61 = vmatpush1.bf16.xpose.msra.mxu0 0
  %62 = vmatprep.subr.bf16.mxu0 0
  %63 = vmatpush1.bf16.xpose.msra.mxu0 0
  %64 = vmatprep.subr.bf16.mxu0 0
  %65 = vmatpush1.bf16.xpose.msra.mxu0 %v50
  %66 = vmatprep.subr.bf16.mxu0 0
  %67 = vmatpush1.bf16.xpose.msra.mxu0 %v47
  %68 = vmatprep.subr.bf16.mxu0 0
  %69 = vmatpush2.bf16.xpose.msra.mxu0 0
  %70 = vmatprep.subr.bf16.mxu0 0
  %71 = vmatpush2.bf16.xpose.msra.mxu0 0
  %72 = vmatprep.subr.bf16.mxu0 0
  %73 = vmatpush2.bf16.xpose.msra.mxu0 0
  %74 = vmatprep.subr.bf16.mxu0 0
  %75 = vmatpush2.bf16.xpose.msra.mxu0 0
  %76 = vmatprep.subr.bf16.mxu0 0
  %77 = vmatpush2.bf16.xpose.msra.mxu0 0
  %78 = vmatprep.subr.bf16.mxu0 0
  %79 = vmatpush2.bf16.xpose.msra.mxu0 0
  %80 = vmatprep.subr.bf16.mxu0 0
  %81 = vmatpush2.bf16.xpose.msra.mxu0 0
  %82 = vmatprep.subr.bf16.mxu0 0
  %83 = vmatpush2.bf16.xpose.msra.mxu0 0
  %84 = vmatprep.mubr.bf16.mxu0 0
  %85 = vmatmul.mubr.bf16.gmra.mxu0 %v44
  %v86 = vpop.f32.mrf.mxu0
  %v87 = vadd.f32 0.0, %v86
  %v88 = vpop.f32.mrf.mxu0
  %v89 = vpop.f32.mrf.mxu0
  %v90 = vadd.f32 0.0, %v89
  %v91 = vpop.f32.mrf.mxu0
  %92 = vdwg.mxu0
  %v93 = vadd.f32 %v31, %v87
  %v94 = vadd.f32 %v32, %v90
  %vm95 = vcmask 261120
  %96 = vst.msk [vmem:[#allocation2] sm:$0xff] %vm95, %v93
  %97 = vst.msk [vmem:[#allocation2 + $0x8] sm:$0xff] %vm95, %v94
  // Predicated region
  $region30: #{ssp_forward.17} parent=0 // pred_check
    %p98 = pneg %p24
  $region31: #{ssp_forward.17} parent=0 // pred_check_branch
    %100 = sbr.rel (%p98) target = $region33
  $region32: #{ssp_forward.17} parent=0 // pred_region
    %v101 = vld [vmem:[#allocation2] sm:$0xff]
    %v102 = vld [vmem:[#allocation2 + $0x8] sm:$0xff]
    %v103 = vld [vmem:[%s2] sm:$0x1]
    %v105 = vlaneseq
    %v106 = vshrl.u32 %v105, 7
    %v107 = vsub.s32 0, %v106
    %v108 = vrot.slane %v103, %v107
    %v110 = vadd.f32 %v101, %v108
    %v111 = vadd.f32 %v102, %v108
    %v112 = vld [vmem:[%s3] sm:$0xff]
    %v113 = vld [vmem:[%s3 + $0x8] sm:$0xff]
    %v114 = vadd.f32 %v110, %v112
    %v115 = vadd.f32 %v111, %v113
    %v116 = vsel %vm95, %v114, 0.0
    %117 = vadd.xlane.f32.xlu0 %v116
    %v118 = vpop.xlane.xlu0 %117
    %v119 = vsel %vm95, %v115, 0.0
    %120 = vadd.xlane.f32.xlu0 %v119
    %v121 = vpop.xlane.xlu0 %120
    %v122 = vrcp.pop 32.0
    %v123 = vmul.f32 %v118, %v122
    %v124 = vmul.f32 %v121, %v122
    %v125 = vsub.f32 %v114, %v123
    %v126 = vsub.f32 %v115, %v124
    %v127 = vmul.f32 %v125, %v125
    %v128 = vmul.f32 %v126, %v126
    %v129 = vsel %vm95, %v127, 0.0
    %130 = vadd.xlane.f32.xlu0 %v129
    %v131 = vpop.xlane.xlu0 %130
    %v132 = vsel %vm95, %v128, 0.0
    %133 = vadd.xlane.f32.xlu0 %v132
    %v134 = vpop.xlane.xlu0 %133
    %v135 = vmul.f32 %v131, %v122
    %v136 = vmul.f32 %v134, %v122
    %v137 = vadd.f32 %v135, 1e-06
    %v138 = vadd.f32 %v136, 1e-06
    %v139 = vrsqrt.pop %v137
    %v140 = vrsqrt.pop %v138
    %v141 = vmul.f32 %v125, %v139
    %v142 = vmul.f32 %v126, %v140
    %v143 = vld [vmem:[%s4] sm:$0x1]
    %v145 = vlaneseq
    %v146 = vshrl.u32 %v145, 7
    %v147 = vsub.s32 0, %v146
    %v148 = vrot.slane %v143, %v147
    %v150 = vmul.f32 %v141, %v148
    %v151 = vmul.f32 %v142, %v148
    %v152 = vld [vmem:[%s5] sm:$0x1]
    %v154 = vlaneseq
    %v155 = vshrl.u32 %v154, 7
    %v156 = vsub.s32 0, %v155
    %v157 = vrot.slane %v152, %v156
    %v159 = vadd.f32 %v150, %v157
    %v160 = vadd.f32 %v151, %v157
    %161 = vst.msk [vmem:[%s6] sm:$0xff] %vm95, %v159
    %162 = vst.msk [vmem:[%s6 + $0x8] sm:$0xff] %vm95, %v160
  $region33: #{ssp_forward.17} parent=0 // pred_fallthru
    _
  // Predicated region
  $region34: #{ssp_forward.17} parent=0 // pred_check
    _
  $region35: #{ssp_forward.17} parent=0 // pred_check_branch
    %164 = sbr.rel (0) target = $region37
  $region36: #{ssp_forward.17} parent=0 // pred_region
    _
  $region37: #{ssp_forward.17} parent=0 // pred_fallthru
    _
  // Predicated region
  $region38: #{ssp_forward.17} parent=0 // pred_check
    _
  $region39: #{ssp_forward.17} parent=0 // pred_check_branch
    %166 = sbr.rel (0) target = $region41
  $region40: #{ssp_forward.17} parent=0 // pred_region
    _
  $region41: #{ssp_forward.17} parent=0 // pred_fallthru
    _

// kernel: ssp_forward.23
$region0: #{ssp_forward.23}
  #allocation0 [shape = 'u32[]', space=smem, size = 0x4, offset = 0x4, fixed_abs, tag = 'smem constant byte address 0x4 - core index']
  #allocation1 [shape = 'u32[144,128]{1,0:T(1,128)}', space=vmem, size = 0x12000, scoped, tag = 'internal scratch']
  #allocation2 [shape = 'f32[16,64]{1,0:T(8,128)}', space=vmem, size = 0x2000, scoped, tag = 'scratch operand']
  %s0 = inlined_call_operand.vmem [shape: f32[16,32], index: 0, kind: input, shape index: {}]
  %s1 = inlined_call_operand.vmem [shape: f32[64,32], index: 1, kind: input, shape index: {}]
  %s2 = inlined_call_operand.vmem [shape: f32[1,64], index: 2, kind: input, shape index: {}]
  %s3 = inlined_call_operand.hbm [shape: f32[16,64], index: 3, kind: output, shape index: {}]
  %s4 = sld [smem:[#allocation0]]
  $region30: #{ssp_forward.23} parent=0
    _
  %s6 = ssub.s32 1, %s4
  %s7 = scalar_select 0, %s6, %s4
  $region1: #{ssp_forward.23} parent=0
    #allocation3 [shape = 'u8[8192]{0}', space=vmem, size = 0x2000, scoped, tag = 'output window, operand 0, single buffered']
    #allocation4 [shape = 's32[1]{0}', space=sflag, size = 0x4, scoped, tag = 'scoped memory for ssp_forward.23']
    %8 = vsyncpa [#allocation4], 0
    // Predicated region
    $region2: #{ssp_forward.23} parent=1 // pred_check
      _
    $region3: #{ssp_forward.23} parent=1 // pred_check_branch
      %10 = sbr.rel (0) target = $region5
    $region4: #{ssp_forward.23} parent=1 // pred_region
      _
    $region5: #{ssp_forward.23} parent=1 // pred_fallthru
      _
    // Predicated region
    $region6: #{ssp_forward.23} parent=1 // pred_check
      _
    $region7: #{ssp_forward.23} parent=1 // pred_check_branch
      %12 = sbr.rel (0) target = $region9
    $region8: #{ssp_forward.23} parent=1 // pred_region
      _
    $region9: #{ssp_forward.23} parent=1 // pred_fallthru
      _
    // Predicated region
    $region10: #{ssp_forward.23} parent=1 // pred_check
      _
    $region11: #{ssp_forward.23} parent=1 // pred_check_branch
      %14 = sbr.rel (0) target = $region13
    $region12: #{ssp_forward.23} parent=1 // pred_region
      _
    $region13: #{ssp_forward.23} parent=1 // pred_fallthru
      _
    %p16 = scmp.eq.s32.totalorder 0, 0
    // Predicated region
    $region14: #{ssp_forward.23} parent=1 // pred_check
      %p17 = pneg %p16
    $region15: #{ssp_forward.23} parent=1 // pred_check_branch
      %19 = sbr.rel (%p17) target = $region17
    $region16: #{ssp_forward.23} parent=1 // pred_region
      %vm20 = vcmask 523264
      %21 = vst.msk [vmem:[#allocation2] sm:$0xff] %vm20, 0.0
      %22 = vst.msk [vmem:[#allocation2 + $0x8] sm:$0xff] %vm20, 0.0
    $region17: #{ssp_forward.23} parent=1 // pred_fallthru
      _
    %v23 = vld [vmem:[#allocation2] sm:$0xff]
    %v24 = vld [vmem:[#allocation2 + $0x8] sm:$0xff]
    %v25 = vld [vmem:[%s0] sm:$0xff]
    %v26 = vld [vmem:[%s0 + $0x8] sm:$0xff]
    %v27 = vpack.c.bf16 %v26, %v25
    %v28 = vld [vmem:[%s1] sm:$0xff]
    %v29 = vld [vmem:[%s1 + $0x8] sm:$0xff]
    %v30 = vld [vmem:[%s1 + $0x10] sm:$0xff]
    %v31 = vld [vmem:[%s1 + $0x18] sm:$0xff]
    %v32 = vld [vmem:[%s1 + $0x20] sm:$0xff]
    %v33 = vld [vmem:[%s1 + $0x28] sm:$0xff]
    %v34 = vld [vmem:[%s1 + $0x30] sm:$0xff]
    %v35 = vld [vmem:[%s1 + $0x38] sm:$0xff]
    %v36 = vpack.c.bf16 %v29, %v28
    %v37 = vpack.c.bf16 %v31, %v30
    %v38 = vpack.c.bf16 %v33, %v32
    %v39 = vpack.c.bf16 %v35, %v34
    %vm40 = vcmask 261120
    %v42 = vsel %vm40, %v27, 0
    %v45 = vsel %vm40, %v36, 0
    %v48 = vsel %vm40, %v37, 0
    %v51 = vsel %vm40, %v38, 0
    %v54 = vsel %vm40, %v39, 0
    %56 = vmatprep.subr.bf16.mxu0 0
    %57 = vmatpush1.bf16.xpose.msra.mxu0 0
    %58 = vmatprep.subr.bf16.mxu0 0
    %59 = vmatpush1.bf16.xpose.msra.mxu0 0
    %60 = vmatprep.subr.bf16.mxu0 0
    %61 = vmatpush1.bf16.xpose.msra.mxu0 0
    %62 = vmatprep.subr.bf16.mxu0 0
    %63 = vmatpush1.bf16.xpose.msra.mxu0 0
    %64 = vmatprep.subr.bf16.mxu0 0
    %65 = vmatpush1.bf16.xpose.msra.mxu0 %v54
    %66 = vmatprep.subr.bf16.mxu0 0
    %67 = vmatpush1.bf16.xpose.msra.mxu0 %v51
    %68 = vmatprep.subr.bf16.mxu0 0
    %69 = vmatpush1.bf16.xpose.msra.mxu0 %v48
    %70 = vmatprep.subr.bf16.mxu0 0
    %71 = vmatpush1.bf16.xpose.msra.mxu0 %v45
    %72 = vmatprep.subr.bf16.mxu0 0
    %73 = vmatpush2.bf16.xpose.msra.mxu0 0
    %74 = vmatprep.subr.bf16.mxu0 0
    %75 = vmatpush2.bf16.xpose.msra.mxu0 0
    %76 = vmatprep.subr.bf16.mxu0 0
    %77 = vmatpush2.bf16.xpose.msra.mxu0 0
    %78 = vmatprep.subr.bf16.mxu0 0
    %79 = vmatpush2.bf16.xpose.msra.mxu0 0
    %80 = vmatprep.subr.bf16.mxu0 0
    %81 = vmatpush2.bf16.xpose.msra.mxu0 0
    %82 = vmatprep.subr.bf16.mxu0 0
    %83 = vmatpush2.bf16.xpose.msra.mxu0 0
    %84 = vmatprep.subr.bf16.mxu0 0
    %85 = vmatpush2.bf16.xpose.msra.mxu0 0
    %86 = vmatprep.subr.bf16.mxu0 0
    %87 = vmatpush2.bf16.xpose.msra.mxu0 0
    %88 = vmatprep.mubr.bf16.mxu0 0
    %89 = vmatmul.mubr.bf16.gmra.mxu0 %v42
    %v90 = vpop.f32.mrf.mxu0
    %v91 = vadd.f32 0.0, %v90
    %v92 = vpop.f32.mrf.mxu0
    %v93 = vpop.f32.mrf.mxu0
    %v94 = vadd.f32 0.0, %v93
    %v95 = vpop.f32.mrf.mxu0
    %96 = vdwg.mxu0
    %v97 = vadd.f32 %v23, %v91
    %v98 = vadd.f32 %v24, %v94
    %vm99 = vcmask 523264
    %100 = vst.msk [vmem:[#allocation2] sm:$0xff] %vm99, %v97
    %101 = vst.msk [vmem:[#allocation2 + $0x8] sm:$0xff] %vm99, %v98
    // Predicated region
    $region18: #{ssp_forward.23} parent=1 // pred_check
      %p102 = pneg %p16
    $region19: #{ssp_forward.23} parent=1 // pred_check_branch
      %104 = sbr.rel (%p102) target = $region21
    $region20: #{ssp_forward.23} parent=1 // pred_region
      %v105 = vld [vmem:[#allocation2] sm:$0xff]
      %v106 = vld [vmem:[#allocation2 + $0x8] sm:$0xff]
      %v107 = vld [vmem:[%s2] sm:$0x1]
      %v109 = vlaneseq
      %v110 = vshrl.u32 %v109, 7
      %v111 = vsub.s32 0, %v110
      %v112 = vrot.slane %v107, %v111
      %v114 = vadd.f32 %v105, %v112
      %v115 = vadd.f32 %v106, %v112
      %116 = vst.msk [vmem:[#allocation3] sm:$0xff] %vm99, %v114
      %117 = vst.msk [vmem:[#allocation3 + $0x8] sm:$0xff] %vm99, %v115
    $region21: #{ssp_forward.23} parent=1 // pred_fallthru
      _
    // Predicated region
    $region22: #{ssp_forward.23} parent=1 // pred_check
      _
    $region23: #{ssp_forward.23} parent=1 // pred_check_branch
      %119 = sbr.rel (0) target = $region25
    $region24: #{ssp_forward.23} parent=1 // pred_region
      %s121 = ssub.s32 256, 256
      %122 = vsyncadd [#allocation4], %s121
      %s123 = sshll.u32 [#allocation3], 4
      %s124 = int_to_ptr.vmem [resolvable:$true] %s123
      %129 = dma.vmem_to_hbm [thread:$0]  %s124, 256, %s3, [#allocation4], 128, 128, 8
    $region25: #{ssp_forward.23} parent=1 // pred_fallthru
      _
    // Predicated region
    $region26: #{ssp_forward.23} parent=1 // pred_check
      _
    $region27: #{ssp_forward.23} parent=1 // pred_check_branch
      %131 = sbr.rel (0) target = $region29
    $region28: #{ssp_forward.23} parent=1 // pred_region
      %132 = dma.done [#allocation4], 256
    $region29: #{ssp_forward.23} parent=1 // pred_fallthru
      _
    %133 = vsyncpa [#allocation4], 1

</llo_original>
